<compile_context>
chip_gen: v5e
topology: v5e:2x2
jax: 0.10.0
libtpu: 0.0.40
codegen_flags: <defaults>
</compile_context>

<pallas_src>
import functools
import math

import jax
import jax.numpy as jnp
from jax.experimental import pallas as pl
from jax.experimental.pallas import tpu as pltpu


# bf16 MXU inputs with f32 accumulation (native MXU path on v5e/v6e/v7x).
# Set to jnp.float32 for bit-faithful parity with the f32 PyTorch module.
MATMUL_COMPUTE_DTYPE = jnp.bfloat16

# Explicit scoped-VMEM limit: raises v5e's 16 MiB default, matches the v6e/v7x
# 32 MiB default, stays under v7x's 64 MiB physical VMEM.
_VMEM_LIMIT_BYTES = 32 * 1024 * 1024

_LN_EPS = 1e-5  # PyTorch nn.LayerNorm default


# ------------------------------ tiling helpers ------------------------------ #
def _pick_tile(dim, target, unit, *, min_tiles=1):
    """Largest `unit`-aligned divisor of `dim` that is <= `target`, preferring a
    choice giving >= `min_tiles` grid steps (feeds both v7x TensorCores).
    Falls back to the full dimension (always a legal block)."""
    cands = [d for d in range(unit, min(dim, target) + 1, unit) if dim % d == 0]
    if not cands:
        return dim
    for d in reversed(cands):
        if dim // d >= min_tiles:
            return d
    return cands[-1]


def _largest_divisor_leq(n, cap):
    for d in range(max(1, min(n, cap)), 0, -1):
        if n % d == 0:
            return d
    return 1


# ------------------------------ linear kernel ------------------------------ #
def _linear_kernel(*refs, has_bias, relu, use_scratch):
    if use_scratch:
        *refs, acc_ref = refs
    if has_bias:
        x_ref, w_ref, b_ref, o_ref = refs
    else:
        x_ref, w_ref, o_ref = refs
        b_ref = None
    if not use_scratch:
        acc_ref = o_ref  # f32 output block doubles as the accumulator

    k = pl.program_id(2)

    # x: (tm, tk); w: (tn, tk) (PyTorch layout) — the weight transpose is folded
    # into the MXU contraction; weights arrive pre-cast (bf16) from HBM.
    part = jax.lax.dot_general(
        x_ref[...].astype(w_ref.dtype), w_ref[...],
        (((1,), (1,)), ((), ())),
        preferred_element_type=jnp.float32)

    @pl.when(k == 0)
    def _():
        acc_ref[...] = part

    @pl.when(k > 0)
    def _():
        acc_ref[...] += part

    if has_bias or relu or use_scratch:
        @pl.when(k == pl.num_programs(2) - 1)
        def _():
            out = acc_ref[...]
            if has_bias:
                out = out + b_ref[...]
            if relu:
                out = jnp.maximum(out, 0.0)
            o_ref[...] = out.astype(o_ref.dtype)


def linear(x2d, w, bias=None, relu=False, *, tm=256, tn=256, tk=512,
           compute_dtype=MATMUL_COMPUTE_DTYPE):
    """x2d: (M, K); w: (N, K) PyTorch nn.Linear layout; bias: (N,) or None."""
    M, K = x2d.shape
    N, K2 = w.shape
    assert K == K2
    tm_e = _pick_tile(M, tm, 8, min_tiles=2)   # >=2 M tiles feeds both v7x TCs
    tn_e = _pick_tile(N, tn, 128)              # lane-aligned output columns
    tk_e = _pick_tile(K, tk, 128)              # lane-aligned contraction tiles
    grid = (M // tm_e, N // tn_e, K // tk_e)   # reduction (K) axis last

    has_bias = bias is not None
    use_scratch = x2d.dtype != jnp.float32     # f32 outputs accumulate in-place
    kernel = functools.partial(_linear_kernel, has_bias=has_bias, relu=relu,
                               use_scratch=use_scratch)

    # Deeper buffering on the weight stream when many K tiles are streamed
    # (GEMV-like skinny-M case, helps v5e's lower HBM bandwidth).
    w_kwargs = {}
    if K // tk_e >= 3:
        w_kwargs["pipeline_mode"] = pl.Buffered(3)

    in_specs = [
        pl.BlockSpec((tm_e, tk_e), lambda i, j, k: (i, k)),
        pl.BlockSpec((tn_e, tk_e), lambda i, j, k: (j, k), **w_kwargs),
    ]
    inputs = [x2d, w.astype(compute_dtype)]    # weights pre-cast OUTSIDE kernel
    if has_bias:
        # index_map independent of k: the (1, tn) bias block is fetched once per
        # (i, j) output tile and not re-DMA'd across the K loop.
        in_specs.append(pl.BlockSpec((1, tn_e), lambda i, j, k: (0, j)))
        inputs.append(bias.reshape(1, N))

    scratch_shapes = ([pltpu.VMEM((tm_e, tn_e), jnp.float32)]
                      if use_scratch else [])

    return pl.pallas_call(
        kernel,
        out_shape=jax.ShapeDtypeStruct((M, N), x2d.dtype),
        grid=grid,
        in_specs=in_specs,
        out_specs=pl.BlockSpec((tm_e, tn_e), lambda i, j, k: (i, j)),
        scratch_shapes=scratch_shapes,
        compiler_params=pltpu.CompilerParams(
            dimension_semantics=("parallel", "parallel", "arbitrary"),
            vmem_limit_bytes=_VMEM_LIMIT_BYTES),
    )(*inputs)


# ----------------------------- attention kernel ----------------------------- #
def _self_attn_kernel(x_ref, o_ref, *, scale, masked, compute_dtype):
    xv = x_ref[0]                                     # (hpg, T, hs); V == K == Q
    q = (xv * scale).astype(compute_dtype)            # fold 1/sqrt(hs) into Q
    kv = xv.astype(compute_dtype)
    s = jnp.einsum("hqd,hkd->hqk", q, kv,
                   preferred_element_type=jnp.float32)  # (hpg, T, T) f32
    if masked:  # Encoder uses masked=False; kept for completeness
        T = s.shape[-1]
        r = jax.lax.broadcasted_iota(jnp.int32, (T, T), 0)
        c = jax.lax.broadcasted_iota(jnp.int32, (T, T), 1)
        s = jnp.where((r >= c)[None, :, :], s, -1e30)
    m = jnp.max(s, axis=-1, keepdims=True)
    p = jnp.exp(s - m)
    p = p / jnp.sum(p, axis=-1, keepdims=True)         # exact softmax (parity)
    out = jnp.einsum("hqk,hkd->hqd", p.astype(compute_dtype), kv,
                     preferred_element_type=jnp.float32)
    o_ref[0] = out.astype(o_ref.dtype)


def self_attention(xh, *, masked=False, compute_dtype=MATMUL_COMPUTE_DTYPE,
                   score_budget_bytes=2 * 1024 * 1024):
    """xh: (B, nh, T, hs) with V == K == Q == xh (Encoder self-attention)."""
    B, nh, T, hs = xh.shape
    # Heads per grid step: as many as keep the live f32 score/prob temps within
    # the budget (so the (nh,T,T) scores never blow scoped VMEM at large T),
    # while keeping >= 2 parallel grid steps so both v7x TensorCores are fed.
    per_head_bytes = 3 * T * T * 4
    hpg = _largest_divisor_leq(nh, max(1, score_budget_bytes // per_head_bytes))
    if B * (nh // hpg) < 2 and hpg > 1:
        hpg = _largest_divisor_leq(nh, hpg // 2)

    scale = 1.0 / math.sqrt(float(hs))
    kernel = functools.partial(_self_attn_kernel, scale=scale, masked=masked,
                               compute_dtype=compute_dtype)
    return pl.pallas_call(
        kernel,
        out_shape=jax.ShapeDtypeStruct((B, nh, T, hs), xh.dtype),
        grid=(B, nh // hpg),
        in_specs=[pl.BlockSpec((1, hpg, T, hs), lambda b, h: (b, h, 0, 0))],
        out_specs=pl.BlockSpec((1, hpg, T, hs), lambda b, h: (b, h, 0, 0)),
        compiler_params=pltpu.CompilerParams(
            dimension_semantics=("parallel", "parallel"),
            vmem_limit_bytes=_VMEM_LIMIT_BYTES),
    )(xh)


# --------------- fused out-proj + LN1 + FeedForward + LN2 kernel ------------- #
def _layer_norm_f32(y, gamma, beta, eps):
    mean = jnp.mean(y, axis=-1, keepdims=True)
    c = y - mean
    var = jnp.mean(c * c, axis=-1, keepdims=True)
    return c * jax.lax.rsqrt(var + eps) * gamma + beta


def _out_ffn_norm_kernel(res_ref, skip_ref, ow_ref, ob_ref, g1_ref, b1_ref,
                         w1_ref, bb1_ref, w2_ref, bb2_ref, g2_ref, b2_ref,
                         o_ref, *, eps):
    cdt = ow_ref.dtype        # matmul compute dtype (weights pre-cast in HBM)
    res = res_ref[...]        # (tm, E) attention rows (f32)
    skip = skip_ref[...]      # (tm, E) residual rows  (f32)

    # MHA output projection + bias + residual + LayerNorm1 (f32 epilogue).
    y = jax.lax.dot_general(res.astype(cdt), ow_ref[...],
                            (((1,), (1,)), ((), ())),
                            preferred_element_type=jnp.float32)
    x1 = _layer_norm_f32(y + ob_ref[...] + skip, g1_ref[...], b1_ref[...], eps)

    # FeedForward (linear -> relu -> linear) + residual + LayerNorm2.
    h = jax.lax.dot_general(x1.astype(cdt), w1_ref[...],
                            (((1,), (1,)), ((), ())),
                            preferred_element_type=jnp.float32)
    h = jnp.maximum(h + bb1_ref[...], 0.0)
    y2 = jax.lax.dot_general(h.astype(cdt), w2_ref[...],
                             (((1,), (1,)), ((), ())),
                             preferred_element_type=jnp.float32)
    x2 = _layer_norm_f32(y2 + bb2_ref[...] + x1, g2_ref[...], b2_ref[...], eps)
    o_ref[...] = x2.astype(o_ref.dtype)


def attn_out_ffn_block(res2d, x2d, p, *, tm=256,
                       compute_dtype=MATMUL_COMPUTE_DTYPE, eps=_LN_EPS):
    """Fused out-projection + residual + LN1 + FFN + residual + LN2 (one call)."""
    M, E = x2d.shape
    H = p["ff1_w"].shape[0]
    tm_e = _pick_tile(M, tm, 8, min_tiles=2)   # >=2 row tiles feeds both v7x TCs
    row = lambda i: (i, 0)
    const = lambda i: (0, 0)                   # constant index map -> weights /
    #                                            LN params are DMA'd only once.
    kernel = functools.partial(_out_ffn_norm_kernel, eps=eps)
    # NOTE: with production E (multiple of 128) the (tm, E) output slab is
    # lane-dense (unmasked vst); at E=32 the model dims themselves bound lanes.
    # TODO(synk): for very large E*ff_scale stream ff1_w/ff2_w with a K-tiled
    # reduction grid instead of holding the whole weights in VMEM.
    return pl.pallas_call(
        kernel,
        out_shape=jax.ShapeDtypeStruct((M, E), x2d.dtype),
        grid=(M // tm_e,),
        in_specs=[
            pl.BlockSpec((tm_e, E), row),      # attention rows
            pl.BlockSpec((tm_e, E), row),      # residual rows
            pl.BlockSpec((E, E), const),       # out_w  (compute dtype)
            pl.BlockSpec((1, E), const),       # out_b  (f32)
            pl.BlockSpec((1, E), const),       # ln1 gamma
            pl.BlockSpec((1, E), const),       # ln1 beta
            pl.BlockSpec((H, E), const),       # ff1_w  (compute dtype)
            pl.BlockSpec((1, H), const),       # ff1_b
            pl.BlockSpec((E, H), const),       # ff2_w  (compute dtype)
            pl.BlockSpec((1, E), const),       # ff2_b
            pl.BlockSpec((1, E), const),       # ln2 gamma
            pl.BlockSpec((1, E), const),       # ln2 beta
        ],
        out_specs=pl.BlockSpec((tm_e, E), row),
        compiler_params=pltpu.CompilerParams(
            dimension_semantics=("parallel",),
            vmem_limit_bytes=_VMEM_LIMIT_BYTES),
    )(res2d, x2d,
      p["out_w"].astype(compute_dtype), p["out_b"].reshape(1, E),
      p["ln1_g"].reshape(1, E), p["ln1_b"].reshape(1, E),
      p["ff1_w"].astype(compute_dtype), p["ff1_b"].reshape(1, H),
      p["ff2_w"].astype(compute_dtype), p["ff2_b"].reshape(1, E),
      p["ln2_g"].reshape(1, E), p["ln2_b"].reshape(1, E))


# ------------------------------ module forward ------------------------------ #
def encoder_block(x, p, head_size, *, compute_dtype=MATMUL_COMPUTE_DTYPE):
    B, T, E = x.shape
    nh = E // head_size
    M = B * T
    x2d = x.reshape(M, E)

    # MultiHeadAttention: V == K == Q == x, so core(concat(V,K,Q)).split(...) is
    # three identical copies of core(x) -> compute the bias-free core once.
    core = linear(x2d, p["core_w"], bias=None, compute_dtype=compute_dtype)
    # PyTorch-style .view(B, nh, T, hs): pure reshape of contiguous memory
    # (free XLA metadata change), NOT the conventional transposed head split.
    xh = core.reshape(B, nh, T, head_size)
    attn = self_attention(xh, masked=False, compute_dtype=compute_dtype)
    res2d = attn.reshape(M, E)                       # .view(B, T, E)

    # Fused: out-projection + bias + residual + LN1 + FFN + residual + LN2.
    out = attn_out_ffn_block(res2d, x2d, p, compute_dtype=compute_dtype)
    return out.reshape(B, T, E)


@functools.partial(jax.jit, static_argnames=("head_size",))
def encoder_forward(token_ids, params, *, head_size):
    # TODO(synk): embedding row-gather left to XLA (data-dependent indexing; a
    # Pallas version needs PrefetchScalarGridSpec + pl.Element row index maps).
    x = jnp.take(params["tok_emb"], token_ids, axis=0)       # (B, T, E)
    x = x + params["pos_emb"][None, :, :]                     # positions
    for blk in params["blocks"]:
        x = encoder_block(x, blk, head_size)
    return x


# ------------------------------- param init -------------------------------- #
def init_params(key, n_blocks, vocab, E, T, ff_scale):
    keys = jax.random.split(key, 2 + n_blocks)
    tok = jax.random.normal(keys[0], (vocab, E), jnp.float32)
    pos = jax.random.normal(keys[1], (T, E), jnp.float32)
    H = E * ff_scale
    bE = 1.0 / math.sqrt(E)
    bH = 1.0 / math.sqrt(H)
    blocks = []
    for i in range(n_blocks):
        ks = jax.random.split(keys[2 + i], 7)
        blocks.append(dict(
            core_w=jax.random.uniform(ks[0], (E, E), jnp.float32, -bE, bE),
            out_w=jax.random.uniform(ks[1], (E, E), jnp.float32, -bE, bE),
            out_b=jax.random.uniform(ks[2], (E,), jnp.float32, -bE, bE),
            ln1_g=jnp.ones((E,), jnp.float32),
            ln1_b=jnp.zeros((E,), jnp.float32),
            ff1_w=jax.random.uniform(ks[3], (H, E), jnp.float32, -bE, bE),
            ff1_b=jax.random.uniform(ks[4], (H,), jnp.float32, -bE, bE),
            ff2_w=jax.random.uniform(ks[5], (E, H), jnp.float32, -bH, bH),
            ff2_b=jax.random.uniform(ks[6], (E,), jnp.float32, -bH, bH),
            ln2_g=jnp.ones((E,), jnp.float32),
            ln2_b=jnp.zeros((E,), jnp.float32),
        ))
    return dict(tok_emb=tok, pos_emb=pos, blocks=tuple(blocks))


if __name__ == "__main__":
    N_BLOCKS = 2     # N encoder blocks
    VOCAB = 50       # vocab_size
    E = 32           # n_embeddings
    T = 8            # time (block size)
    HEAD = 8         # head_size  -> nh = 4
    FF_SCALE = 4     # ff_scale
    B = 2            # batch

    key = jax.random.PRNGKey(0)
    k_params, k_ids = jax.random.split(key)
    params = init_params(k_params, N_BLOCKS, VOCAB, E, T, FF_SCALE)
    token_ids = jax.random.randint(k_ids, (B, T), 0, VOCAB, dtype=jnp.int32)

    out = encoder_forward(token_ids, params, head_size=HEAD)
    jax.block_until_ready(out)
    assert out.shape == (B, T, E)
    assert bool(jnp.all(jnp.isfinite(out)))
    print("KERNEL_OK")
</pallas_src>

<mosaic_0001>
module attributes {stable_mosaic.version = 11 : i64} {
  func.func @_linear_kernel(%arg0: i32, %arg1: i32, %arg2: i32, %arg3: memref<8x32xf32, #tpu.memory_space<vmem>>, %arg4: memref<32x32xbf16, #tpu.memory_space<vmem>>, %arg5: memref<8x32xf32, #tpu.memory_space<vmem>>) attributes {dimension_semantics = [#tpu.dimension_semantics<parallel>, #tpu.dimension_semantics<parallel>, #tpu.dimension_semantics<arbitrary>], iteration_bounds = array<i64: 2, 1, 1>, scalar_prefetch = 0 : i64, scratch_operands = 0 : i64, tpu.core_type = #tpu.core_type<tc>, window_params = [{transform_indices = @transform_0, window_bounds = array<i64: 8, 32>}, {transform_indices = @transform_1, window_bounds = array<i64: 32, 32>}, {transform_indices = @transform_2, window_bounds = array<i64: 8, 32>}]} {
    %c0 = arith.constant 0 : index
    %c0_0 = arith.constant 0 : index
    %0 = vector.load %arg3[%c0, %c0_0] : memref<8x32xf32, #tpu.memory_space<vmem>>, vector<8x32xf32>
    %1 = arith.truncf %0 : vector<8x32xf32> to vector<8x32xbf16>
    %c0_1 = arith.constant 0 : index
    %c0_2 = arith.constant 0 : index
    %2 = vector.load %arg4[%c0_1, %c0_2] : memref<32x32xbf16, #tpu.memory_space<vmem>>, vector<32x32xbf16>
    %cst = arith.constant dense<0.000000e+00> : vector<8x32xf32>
    %3 = tpu.matmul %1, %2, %cst {dimension_numbers = #tpu.dot_dimension_numbers<[1], [1], [0], [0], [0, 0, 1, 0], [], []>} : vector<8x32xbf16>, vector<32x32xbf16>, vector<8x32xf32> -> vector<8x32xf32>
    %c0_i32 = arith.constant 0 : i32
    %4 = arith.cmpi eq, %arg2, %c0_i32 : i32
    %5 = arith.extui %4 : i1 to i32
    %c0_i32_3 = arith.constant 0 : i32
    %6 = arith.cmpi ne, %5, %c0_i32_3 : i32
    scf.if %6 {
      %c0_6 = arith.constant 0 : index
      %c0_7 = arith.constant 0 : index
      %10 = vector.load %arg5[%c0_6, %c0_7] : memref<8x32xf32, #tpu.memory_space<vmem>>, vector<8x32xf32>
      tpu.vector_store %arg5[%c0_6, %c0_7], %3 {strides = array<i32>} : memref<8x32xf32, #tpu.memory_space<vmem>>, vector<8x32xf32>,
    } else {
    }
    %c0_i32_4 = arith.constant 0 : i32
    %7 = arith.cmpi sgt, %arg2, %c0_i32_4 : i32
    %8 = arith.extui %7 : i1 to i32
    %c0_i32_5 = arith.constant 0 : i32
    %9 = arith.cmpi ne, %8, %c0_i32_5 : i32
    scf.if %9 {
      %c0_6 = arith.constant 0 : index
      %c0_7 = arith.constant 0 : index
      %10 = vector.load %arg5[%c0_6, %c0_7] : memref<8x32xf32, #tpu.memory_space<vmem>>, vector<8x32xf32>
      %11 = arith.addf %10, %3 : vector<8x32xf32>
      %c0_8 = arith.constant 0 : index
      %c0_9 = arith.constant 0 : index
      %12 = vector.load %arg5[%c0_8, %c0_9] : memref<8x32xf32, #tpu.memory_space<vmem>>, vector<8x32xf32>
      tpu.vector_store %arg5[%c0_8, %c0_9], %11 {strides = array<i32>} : memref<8x32xf32, #tpu.memory_space<vmem>>, vector<8x32xf32>,
    } else {
    }
    return
  }
  func.func @transform_0(%arg0: i32, %arg1: i32, %arg2: i32) -> (i32, i32) {
    %c0_i32 = arith.constant 0 : i32
    return %arg0, %arg2 : i32, i32
  }
  func.func @transform_1(%arg0: i32, %arg1: i32, %arg2: i32) -> (i32, i32) {
    %c0_i32 = arith.constant 0 : i32
    return %arg1, %arg2 : i32, i32
  }
  func.func @transform_2(%arg0: i32, %arg1: i32, %arg2: i32) -> (i32, i32) {
    %c0_i32 = arith.constant 0 : i32
    return %arg0, %arg1 : i32, i32
  }
}

module attributes {stable_mosaic.version = 11 : i64} {
  func.func @_self_attn_kernel(%arg0: i32, %arg1: i32, %arg2: memref<1x4x8x8xf32, #tpu.memory_space<vmem>>, %arg3: memref<1x4x8x8xf32, #tpu.memory_space<vmem>>) attributes {dimension_semantics = [#tpu.dimension_semantics<parallel>, #tpu.dimension_semantics<parallel>], iteration_bounds = array<i64: 2, 1>, scalar_prefetch = 0 : i64, scratch_operands = 0 : i64, tpu.core_type = #tpu.core_type<tc>, window_params = [{transform_indices = @transform_0, window_bounds = array<i64: 1, 4, 8, 8>}, {transform_indices = @transform_1, window_bounds = array<i64: 1, 4, 8, 8>}]} {
    %c0 = arith.constant 0 : index
    %c0_0 = arith.constant 0 : index
    %c0_1 = arith.constant 0 : index
    %c0_2 = arith.constant 0 : index
    %0 = vector.load %arg2[%c0, %c0_0, %c0_1, %c0_2] : memref<1x4x8x8xf32, #tpu.memory_space<vmem>>, vector<1x4x8x8xf32>
    %1 = vector.shape_cast %0 : vector<1x4x8x8xf32> to vector<4x8x8xf32>
    %cst = arith.constant 0.353553385 : f32
    %2 = vector.broadcast %cst : f32 to vector<4x8x8xf32>
    %3 = arith.mulf %1, %2 : vector<4x8x8xf32>
    %4 = arith.truncf %3 : vector<4x8x8xf32> to vector<4x8x8xbf16>
    %5 = arith.truncf %1 : vector<4x8x8xf32> to vector<4x8x8xbf16>
    "tpu.trace_start"() <{level = 10 : i32, message = "hqd,hkd->hqk"}> : () -> ()
    %cst_3 = arith.constant dense<0.000000e+00> : vector<4x8x8xf32>
    %6 = tpu.matmul %4, %5, %cst_3 {dimension_numbers = #tpu.dot_dimension_numbers<[2], [2], [1], [1], [0, 0, 0, 1, 1, 1], [0], [0]>} : vector<4x8x8xbf16>, vector<4x8x8xbf16>, vector<4x8x8xf32> -> vector<4x8x8xf32>
    "tpu.trace_stop"() : () -> ()
    %cst_4 = arith.constant dense<0xFF800000> : vector<4x8xf32>
    %7 = vector.multi_reduction <maximumf>, %6, %cst_4 [2] : vector<4x8x8xf32> to vector<4x8xf32>
    %8 = vector.shape_cast %7 : vector<4x8xf32> to vector<4x8x1xf32>
    %9 = vector.broadcast %8 : vector<4x8x1xf32> to vector<4x8x8xf32>
    %10 = arith.subf %6, %9 : vector<4x8x8xf32>
    %11 = math.exp %10 : vector<4x8x8xf32>
    %cst_5 = arith.constant dense<0.000000e+00> : vector<4x8xf32>
    %12 = vector.multi_reduction <add>, %11, %cst_5 [2] : vector<4x8x8xf32> to vector<4x8xf32>
    %13 = vector.shape_cast %12 : vector<4x8xf32> to vector<4x8x1xf32>
    %14 = vector.broadcast %13 : vector<4x8x1xf32> to vector<4x8x8xf32>
    %15 = arith.divf %11, %14 : vector<4x8x8xf32>
    %16 = arith.truncf %15 : vector<4x8x8xf32> to vector<4x8x8xbf16>
    "tpu.trace_start"() <{level = 10 : i32, message = "hqk,hkd->hqd"}> : () -> ()
    %cst_6 = arith.constant dense<0.000000e+00> : vector<4x8x8xf32>
    %17 = tpu.matmul %16, %5, %cst_6 {dimension_numbers = #tpu.dot_dimension_numbers<[2], [1], [1], [2], [0, 0, 0, 1, 1, 2], [0], [0]>} : vector<4x8x8xbf16>, vector<4x8x8xbf16>, vector<4x8x8xf32> -> vector<4x8x8xf32>
    "tpu.trace_stop"() : () -> ()
    %c0_7 = arith.constant 0 : index
    %c0_8 = arith.constant 0 : index
    %c0_9 = arith.constant 0 : index
    %c0_10 = arith.constant 0 : index
    %18 = vector.load %arg3[%c0_7, %c0_8, %c0_9, %c0_10] : memref<1x4x8x8xf32, #tpu.memory_space<vmem>>, vector<1x4x8x8xf32>
    %19 = vector.shape_cast %18 : vector<1x4x8x8xf32> to vector<4x8x8xf32>
    %20 = vector.shape_cast %17 : vector<4x8x8xf32> to vector<1x4x8x8xf32>
    tpu.vector_store %arg3[%c0_7, %c0_8, %c0_9, %c0_10], %20 {strides = array<i32>} : memref<1x4x8x8xf32, #tpu.memory_space<vmem>>, vector<1x4x8x8xf32>,
    return
  }
  func.func @transform_0(%arg0: i32, %arg1: i32) -> (i32, i32, i32, i32) {
    %c0_i32 = arith.constant 0 : i32
    %c0_i32_0 = arith.constant 0 : i32
    %c0_i32_1 = arith.constant 0 : i32
    return %arg0, %arg1, %c0_i32, %c0_i32_0 : i32, i32, i32, i32
  }
  func.func @transform_1(%arg0: i32, %arg1: i32) -> (i32, i32, i32, i32) {
    %c0_i32 = arith.constant 0 : i32
    %c0_i32_0 = arith.constant 0 : i32
    %c0_i32_1 = arith.constant 0 : i32
    return %arg0, %arg1, %c0_i32, %c0_i32_0 : i32, i32, i32, i32
  }
}

module attributes {stable_mosaic.version = 11 : i64} {
  func.func @_out_ffn_norm_kernel(%arg0: i32, %arg1: memref<8x32xf32, #tpu.memory_space<vmem>>, %arg2: memref<8x32xf32, #tpu.memory_space<vmem>>, %arg3: memref<32x32xbf16, #tpu.memory_space<vmem>>, %arg4: memref<1x32xf32, #tpu.memory_space<vmem>>, %arg5: memref<1x32xf32, #tpu.memory_space<vmem>>, %arg6: memref<1x32xf32, #tpu.memory_space<vmem>>, %arg7: memref<128x32xbf16, #tpu.memory_space<vmem>>, %arg8: memref<1x128xf32, #tpu.memory_space<vmem>>, %arg9: memref<32x128xbf16, #tpu.memory_space<vmem>>, %arg10: memref<1x32xf32, #tpu.memory_space<vmem>>, %arg11: memref<1x32xf32, #tpu.memory_space<vmem>>, %arg12: memref<1x32xf32, #tpu.memory_space<vmem>>, %arg13: memref<8x32xf32, #tpu.memory_space<vmem>>) attributes {dimension_semantics = [#tpu.dimension_semantics<parallel>], iteration_bounds = array<i64: 2>, scalar_prefetch = 0 : i64, scratch_operands = 0 : i64, tpu.core_type = #tpu.core_type<tc>, window_params = [{transform_indices = @transform_0, window_bounds = array<i64: 8, 32>}, {transform_indices = @transform_1, window_bounds = array<i64: 8, 32>}, {pipeline_mode = #tpu.pipeline_mode<synchronous>, transform_indices = @transform_2, window_bounds = array<i64: 32, 32>}, {pipeline_mode = #tpu.pipeline_mode<synchronous>, transform_indices = @transform_3, window_bounds = array<i64: 1, 32>}, {pipeline_mode = #tpu.pipeline_mode<synchronous>, transform_indices = @transform_4, window_bounds = array<i64: 1, 32>}, {pipeline_mode = #tpu.pipeline_mode<synchronous>, transform_indices = @transform_5, window_bounds = array<i64: 1, 32>}, {pipeline_mode = #tpu.pipeline_mode<synchronous>, transform_indices = @transform_6, window_bounds = array<i64: 128, 32>}, {pipeline_mode = #tpu.pipeline_mode<synchronous>, transform_indices = @transform_7, window_bounds = array<i64: 1, 128>}, {pipeline_mode = #tpu.pipeline_mode<synchronous>, transform_indices = @transform_8, window_bounds = array<i64: 32, 128>}, {pipeline_mode = #tpu.pipeline_mode<synchronous>, transform_indices = @transform_9, window_bounds = array<i64: 1, 32>}, {pipeline_mode = #tpu.pipeline_mode<synchronous>, transform_indices = @transform_10, window_bounds = array<i64: 1, 32>}, {pipeline_mode = #tpu.pipeline_mode<synchronous>, transform_indices = @transform_11, window_bounds = array<i64: 1, 32>}, {transform_indices = @transform_12, window_bounds = array<i64: 8, 32>}]} {
    %c0 = arith.constant 0 : index
    %c0_0 = arith.constant 0 : index
    %0 = vector.load %arg1[%c0, %c0_0] : memref<8x32xf32, #tpu.memory_space<vmem>>, vector<8x32xf32>
    %c0_1 = arith.constant 0 : index
    %c0_2 = arith.constant 0 : index
    %1 = vector.load %arg2[%c0_1, %c0_2] : memref<8x32xf32, #tpu.memory_space<vmem>>, vector<8x32xf32>
    %2 = arith.truncf %0 : vector<8x32xf32> to vector<8x32xbf16>
    %c0_3 = arith.constant 0 : index
    %c0_4 = arith.constant 0 : index
    %3 = vector.load %arg3[%c0_3, %c0_4] : memref<32x32xbf16, #tpu.memory_space<vmem>>, vector<32x32xbf16>
    %cst = arith.constant dense<0.000000e+00> : vector<8x32xf32>
    %4 = tpu.matmul %2, %3, %cst {dimension_numbers = #tpu.dot_dimension_numbers<[1], [1], [0], [0], [0, 0, 1, 0], [], []>} : vector<8x32xbf16>, vector<32x32xbf16>, vector<8x32xf32> -> vector<8x32xf32>
    %c0_5 = arith.constant 0 : index
    %c0_6 = arith.constant 0 : index
    %5 = vector.load %arg4[%c0_5, %c0_6] : memref<1x32xf32, #tpu.memory_space<vmem>>, vector<1x32xf32>
    %6 = vector.broadcast %5 : vector<1x32xf32> to vector<8x32xf32>
    %7 = arith.addf %4, %6 : vector<8x32xf32>
    %8 = arith.addf %7, %1 : vector<8x32xf32>
    %c0_7 = arith.constant 0 : index
    %c0_8 = arith.constant 0 : index
    %9 = vector.load %arg5[%c0_7, %c0_8] : memref<1x32xf32, #tpu.memory_space<vmem>>, vector<1x32xf32>
    %c0_9 = arith.constant 0 : index
    %c0_10 = arith.constant 0 : index
    %10 = vector.load %arg6[%c0_9, %c0_10] : memref<1x32xf32, #tpu.memory_space<vmem>>, vector<1x32xf32>
    %cst_11 = arith.constant dense<0.000000e+00> : vector<8xf32>
    %11 = vector.multi_reduction <add>, %8, %cst_11 [1] : vector<8x32xf32> to vector<8xf32>
    %12 = vector.shape_cast %11 : vector<8xf32> to vector<8x1xf32>
    %cst_12 = arith.constant 3.200000e+01 : f32
    %13 = vector.broadcast %cst_12 : f32 to vector<8x1xf32>
    %14 = arith.divf %12, %13 : vector<8x1xf32>
    %15 = vector.broadcast %14 : vector<8x1xf32> to vector<8x32xf32>
    %16 = arith.subf %8, %15 : vector<8x32xf32>
    %17 = arith.mulf %16, %16 : vector<8x32xf32>
    %cst_13 = arith.constant dense<0.000000e+00> : vector<8xf32>
    %18 = vector.multi_reduction <add>, %17, %cst_13 [1] : vector<8x32xf32> to vector<8xf32>
    %19 = vector.shape_cast %18 : vector<8xf32> to vector<8x1xf32>
    %cst_14 = arith.constant 3.200000e+01 : f32
    %20 = vector.broadcast %cst_14 : f32 to vector<8x1xf32>
    %21 = arith.divf %19, %20 : vector<8x1xf32>
    %cst_15 = arith.constant 9.99999974E-6 : f32
    %22 = vector.broadcast %cst_15 : f32 to vector<8x1xf32>
    %23 = arith.addf %21, %22 : vector<8x1xf32>
    %24 = math.rsqrt %23 : vector<8x1xf32>
    %25 = vector.broadcast %24 : vector<8x1xf32> to vector<8x32xf32>
    %26 = arith.mulf %16, %25 : vector<8x32xf32>
    %27 = vector.broadcast %9 : vector<1x32xf32> to vector<8x32xf32>
    %28 = arith.mulf %26, %27 : vector<8x32xf32>
    %29 = vector.broadcast %10 : vector<1x32xf32> to vector<8x32xf32>
    %30 = arith.addf %28, %29 : vector<8x32xf32>
    %31 = arith.truncf %30 : vector<8x32xf32> to vector<8x32xbf16>
    %c0_16 = arith.constant 0 : index
    %c0_17 = arith.constant 0 : index
    %32 = vector.load %arg7[%c0_16, %c0_17] : memref<128x32xbf16, #tpu.memory_space<vmem>>, vector<128x32xbf16>
    %cst_18 = arith.constant dense<0.000000e+00> : vector<8x128xf32>
    %33 = tpu.matmul %31, %32, %cst_18 {dimension_numbers = #tpu.dot_dimension_numbers<[1], [1], [0], [0], [0, 0, 1, 0], [], []>} : vector<8x32xbf16>, vector<128x32xbf16>, vector<8x128xf32> -> vector<8x128xf32>
    %c0_19 = arith.constant 0 : index
    %c0_20 = arith.constant 0 : index
    %34 = vector.load %arg8[%c0_19, %c0_20] : memref<1x128xf32, #tpu.memory_space<vmem>>, vector<1x128xf32>
    %35 = vector.broadcast %34 : vector<1x128xf32> to vector<8x128xf32>
    %36 = arith.addf %33, %35 : vector<8x128xf32>
    %cst_21 = arith.constant 0.000000e+00 : f32
    %37 = vector.broadcast %cst_21 : f32 to vector<8x128xf32>
    %38 = arith.maximumf %36, %37 : vector<8x128xf32>
    %39 = arith.truncf %38 : vector<8x128xf32> to vector<8x128xbf16>
    %c0_22 = arith.constant 0 : index
    %c0_23 = arith.constant 0 : index
    %40 = vector.load %arg9[%c0_22, %c0_23] : memref<32x128xbf16, #tpu.memory_space<vmem>>, vector<32x128xbf16>
    %cst_24 = arith.constant dense<0.000000e+00> : vector<8x32xf32>
    %41 = tpu.matmul %39, %40, %cst_24 {dimension_numbers = #tpu.dot_dimension_numbers<[1], [1], [0], [0], [0, 0, 1, 0], [], []>} : vector<8x128xbf16>, vector<32x128xbf16>, vector<8x32xf32> -> vector<8x32xf32>
    %c0_25 = arith.constant 0 : index
    %c0_26 = arith.constant 0 : index
    %42 = vector.load %arg10[%c0_25, %c0_26] : memref<1x32xf32, #tpu.memory_space<vmem>>, vector<1x32xf32>
    %43 = vector.broadcast %42 : vector<1x32xf32> to vector<8x32xf32>
    %44 = arith.addf %41, %43 : vector<8x32xf32>
    %45 = arith.addf %44, %30 : vector<8x32xf32>
    %c0_27 = arith.constant 0 : index
    %c0_28 = arith.constant 0 : index
    %46 = vector.load %arg11[%c0_27, %c0_28] : memref<1x32xf32, #tpu.memory_space<vmem>>, vector<1x32xf32>
    %c0_29 = arith.constant 0 : index
    %c0_30 = arith.constant 0 : index
    %47 = vector.load %arg12[%c0_29, %c0_30] : memref<1x32xf32, #tpu.memory_space<vmem>>, vector<1x32xf32>
    %cst_31 = arith.constant dense<0.000000e+00> : vector<8xf32>
    %48 = vector.multi_reduction <add>, %45, %cst_31 [1] : vector<8x32xf32> to vector<8xf32>
    %49 = vector.shape_cast %48 : vector<8xf32> to vector<8x1xf32>
    %cst_32 = arith.constant 3.200000e+01 : f32
    %50 = vector.broadcast %cst_32 : f32 to vector<8x1xf32>
    %51 = arith.divf %49, %50 : vector<8x1xf32>
    %52 = vector.broadcast %51 : vector<8x1xf32> to vector<8x32xf32>
    %53 = arith.subf %45, %52 : vector<8x32xf32>
    %54 = arith.mulf %53, %53 : vector<8x32xf32>
    %cst_33 = arith.constant dense<0.000000e+00> : vector<8xf32>
    %55 = vector.multi_reduction <add>, %54, %cst_33 [1] : vector<8x32xf32> to vector<8xf32>
    %56 = vector.shape_cast %55 : vector<8xf32> to vector<8x1xf32>
    %cst_34 = arith.constant 3.200000e+01 : f32
    %57 = vector.broadcast %cst_34 : f32 to vector<8x1xf32>
    %58 = arith.divf %56, %57 : vector<8x1xf32>
    %cst_35 = arith.constant 9.99999974E-6 : f32
    %59 = vector.broadcast %cst_35 : f32 to vector<8x1xf32>
    %60 = arith.addf %58, %59 : vector<8x1xf32>
    %61 = math.rsqrt %60 : vector<8x1xf32>
    %62 = vector.broadcast %61 : vector<8x1xf32> to vector<8x32xf32>
    %63 = arith.mulf %53, %62 : vector<8x32xf32>
    %64 = vector.broadcast %46 : vector<1x32xf32> to vector<8x32xf32>
    %65 = arith.mulf %63, %64 : vector<8x32xf32>
    %66 = vector.broadcast %47 : vector<1x32xf32> to vector<8x32xf32>
    %67 = arith.addf %65, %66 : vector<8x32xf32>
    %c0_36 = arith.constant 0 : index
    %c0_37 = arith.constant 0 : index
    %68 = vector.load %arg13[%c0_36, %c0_37] : memref<8x32xf32, #tpu.memory_space<vmem>>, vector<8x32xf32>
    tpu.vector_store %arg13[%c0_36, %c0_37], %67 {strides = array<i32>} : memref<8x32xf32, #tpu.memory_space<vmem>>, vector<8x32xf32>,
    return
  }
  func.func @transform_0(%arg0: i32) -> (i32, i32) {
    %c0_i32 = arith.constant 0 : i32
    %c0_i32_0 = arith.constant 0 : i32
    return %arg0, %c0_i32 : i32, i32
  }
  func.func @transform_1(%arg0: i32) -> (i32, i32) {
    %c0_i32 = arith.constant 0 : i32
    %c0_i32_0 = arith.constant 0 : i32
    return %arg0, %c0_i32 : i32, i32
  }
  func.func @transform_2(%arg0: i32) -> (i32, i32) {
    %c0_i32 = arith.constant 0 : i32
    %c0_i32_0 = arith.constant 0 : i32
    %c0_i32_1 = arith.constant 0 : i32
    return %c0_i32, %c0_i32_0 : i32, i32
  }
  func.func @transform_3(%arg0: i32) -> (i32, i32) {
    %c0_i32 = arith.constant 0 : i32
    %c0_i32_0 = arith.constant 0 : i32
    %c0_i32_1 = arith.constant 0 : i32
    return %c0_i32, %c0_i32_0 : i32, i32
  }
  func.func @transform_4(%arg0: i32) -> (i32, i32) {
    %c0_i32 = arith.constant 0 : i32
    %c0_i32_0 = arith.constant 0 : i32
    %c0_i32_1 = arith.constant 0 : i32
    return %c0_i32, %c0_i32_0 : i32, i32
  }
  func.func @transform_5(%arg0: i32) -> (i32, i32) {
    %c0_i32 = arith.constant 0 : i32
    %c0_i32_0 = arith.constant 0 : i32
    %c0_i32_1 = arith.constant 0 : i32
    return %c0_i32, %c0_i32_0 : i32, i32
  }
  func.func @transform_6(%arg0: i32) -> (i32, i32) {
    %c0_i32 = arith.constant 0 : i32
    %c0_i32_0 = arith.constant 0 : i32
    %c0_i32_1 = arith.constant 0 : i32
    return %c0_i32, %c0_i32_0 : i32, i32
  }
  func.func @transform_7(%arg0: i32) -> (i32, i32) {
    %c0_i32 = arith.constant 0 : i32
    %c0_i32_0 = arith.constant 0 : i32
    %c0_i32_1 = arith.constant 0 : i32
    return %c0_i32, %c0_i32_0 : i32, i32
  }
  func.func @transform_8(%arg0: i32) -> (i32, i32) {
    %c0_i32 = arith.constant 0 : i32
    %c0_i32_0 = arith.constant 0 : i32
    %c0_i32_1 = arith.constant 0 : i32
    return %c0_i32, %c0_i32_0 : i32, i32
  }
  func.func @transform_9(%arg0: i32) -> (i32, i32) {
    %c0_i32 = arith.constant 0 : i32
    %c0_i32_0 = arith.constant 0 : i32
    %c0_i32_1 = arith.constant 0 : i32
    return %c0_i32, %c0_i32_0 : i32, i32
  }
  func.func @transform_10(%arg0: i32) -> (i32, i32) {
    %c0_i32 = arith.constant 0 : i32
    %c0_i32_0 = arith.constant 0 : i32
    %c0_i32_1 = arith.constant 0 : i32
    return %c0_i32, %c0_i32_0 : i32, i32
  }
  func.func @transform_11(%arg0: i32) -> (i32, i32) {
    %c0_i32 = arith.constant 0 : i32
    %c0_i32_0 = arith.constant 0 : i32
    %c0_i32_1 = arith.constant 0 : i32
    return %c0_i32, %c0_i32_0 : i32, i32
  }
  func.func @transform_12(%arg0: i32) -> (i32, i32) {
    %c0_i32 = arith.constant 0 : i32
    %c0_i32_0 = arith.constant 0 : i32
    return %arg0, %c0_i32 : i32, i32
  }
}

module attributes {stable_mosaic.version = 11 : i64} {
  func.func @_out_ffn_norm_kernel(%arg0: i32, %arg1: memref<8x32xf32, #tpu.memory_space<vmem>>, %arg2: memref<8x32xf32, #tpu.memory_space<vmem>>, %arg3: memref<32x32xbf16, #tpu.memory_space<vmem>>, %arg4: memref<1x32xf32, #tpu.memory_space<vmem>>, %arg5: memref<1x32xf32, #tpu.memory_space<vmem>>, %arg6: memref<1x32xf32, #tpu.memory_space<vmem>>, %arg7: memref<128x32xbf16, #tpu.memory_space<vmem>>, %arg8: memref<1x128xf32, #tpu.memory_space<vmem>>, %arg9: memref<32x128xbf16, #tpu.memory_space<vmem>>, %arg10: memref<1x32xf32, #tpu.memory_space<vmem>>, %arg11: memref<1x32xf32, #tpu.memory_space<vmem>>, %arg12: memref<1x32xf32, #tpu.memory_space<vmem>>, %arg13: memref<8x32xf32, #tpu.memory_space<vmem>>) attributes {dimension_semantics = [#tpu.dimension_semantics<parallel>], iteration_bounds = array<i64: 2>, scalar_prefetch = 0 : i64, scratch_operands = 0 : i64, tpu.core_type = #tpu.core_type<tc>, window_params = [{transform_indices = @transform_0, window_bounds = array<i64: 8, 32>}, {transform_indices = @transform_1, window_bounds = array<i64: 8, 32>}, {pipeline_mode = #tpu.pipeline_mode<synchronous>, transform_indices = @transform_2, window_bounds = array<i64: 32, 32>}, {pipeline_mode = #tpu.pipeline_mode<synchronous>, transform_indices = @transform_3, window_bounds = array<i64: 1, 32>}, {pipeline_mode = #tpu.pipeline_mode<synchronous>, transform_indices = @transform_4, window_bounds = array<i64: 1, 32>}, {pipeline_mode = #tpu.pipeline_mode<synchronous>, transform_indices = @transform_5, window_bounds = array<i64: 1, 32>}, {pipeline_mode = #tpu.pipeline_mode<synchronous>, transform_indices = @transform_6, window_bounds = array<i64: 128, 32>}, {pipeline_mode = #tpu.pipeline_mode<synchronous>, transform_indices = @transform_7, window_bounds = array<i64: 1, 128>}, {pipeline_mode = #tpu.pipeline_mode<synchronous>, transform_indices = @transform_8, window_bounds = array<i64: 32, 128>}, {pipeline_mode = #tpu.pipeline_mode<synchronous>, transform_indices = @transform_9, window_bounds = array<i64: 1, 32>}, {pipeline_mode = #tpu.pipeline_mode<synchronous>, transform_indices = @transform_10, window_bounds = array<i64: 1, 32>}, {pipeline_mode = #tpu.pipeline_mode<synchronous>, transform_indices = @transform_11, window_bounds = array<i64: 1, 32>}, {transform_indices = @transform_12, window_bounds = array<i64: 8, 32>}]} {
    %c0 = arith.constant 0 : index
    %c0_0 = arith.constant 0 : index
    %0 = vector.load %arg1[%c0, %c0_0] : memref<8x32xf32, #tpu.memory_space<vmem>>, vector<8x32xf32>
    %c0_1 = arith.constant 0 : index
    %c0_2 = arith.constant 0 : index
    %1 = vector.load %arg2[%c0_1, %c0_2] : memref<8x32xf32, #tpu.memory_space<vmem>>, vector<8x32xf32>
    %2 = arith.truncf %0 : vector<8x32xf32> to vector<8x32xbf16>
    %c0_3 = arith.constant 0 : index
    %c0_4 = arith.constant 0 : index
    %3 = vector.load %arg3[%c0_3, %c0_4] : memref<32x32xbf16, #tpu.memory_space<vmem>>, vector<32x32xbf16>
    %cst = arith.constant dense<0.000000e+00> : vector<8x32xf32>
    %4 = tpu.matmul %2, %3, %cst {dimension_numbers = #tpu.dot_dimension_numbers<[1], [1], [0], [0], [0, 0, 1, 0], [], []>} : vector<8x32xbf16>, vector<32x32xbf16>, vector<8x32xf32> -> vector<8x32xf32>
    %c0_5 = arith.constant 0 : index
    %c0_6 = arith.constant 0 : index
    %5 = vector.load %arg4[%c0_5, %c0_6] : memref<1x32xf32, #tpu.memory_space<vmem>>, vector<1x32xf32>
    %6 = vector.broadcast %5 : vector<1x32xf32> to vector<8x32xf32>
    %7 = arith.addf %4, %6 : vector<8x32xf32>
    %8 = arith.addf %7, %1 : vector<8x32xf32>
    %c0_7 = arith.constant 0 : index
    %c0_8 = arith.constant 0 : index
    %9 = vector.load %arg5[%c0_7, %c0_8] : memref<1x32xf32, #tpu.memory_space<vmem>>, vector<1x32xf32>
    %c0_9 = arith.constant 0 : index
    %c0_10 = arith.constant 0 : index
    %10 = vector.load %arg6[%c0_9, %c0_10] : memref<1x32xf32, #tpu.memory_space<vmem>>, vector<1x32xf32>
    %cst_11 = arith.constant dense<0.000000e+00> : vector<8xf32>
    %11 = vector.multi_reduction <add>, %8, %cst_11 [1] : vector<8x32xf32> to vector<8xf32>
    %12 = vector.shape_cast %11 : vector<8xf32> to vector<8x1xf32>
    %cst_12 = arith.constant 3.200000e+01 : f32
    %13 = vector.broadcast %cst_12 : f32 to vector<8x1xf32>
    %14 = arith.divf %12, %13 : vector<8x1xf32>
    %15 = vector.broadcast %14 : vector<8x1xf32> to vector<8x32xf32>
    %16 = arith.subf %8, %15 : vector<8x32xf32>
    %17 = arith.mulf %16, %16 : vector<8x32xf32>
    %cst_13 = arith.constant dense<0.000000e+00> : vector<8xf32>
    %18 = vector.multi_reduction <add>, %17, %cst_13 [1] : vector<8x32xf32> to vector<8xf32>
    %19 = vector.shape_cast %18 : vector<8xf32> to vector<8x1xf32>
    %cst_14 = arith.constant 3.200000e+01 : f32
    %20 = vector.broadcast %cst_14 : f32 to vector<8x1xf32>
    %21 = arith.divf %19, %20 : vector<8x1xf32>
    %cst_15 = arith.constant 9.99999974E-6 : f32
    %22 = vector.broadcast %cst_15 : f32 to vector<8x1xf32>
    %23 = arith.addf %21, %22 : vector<8x1xf32>
    %24 = math.rsqrt %23 : vector<8x1xf32>
    %25 = vector.broadcast %24 : vector<8x1xf32> to vector<8x32xf32>
    %26 = arith.mulf %16, %25 : vector<8x32xf32>
    %27 = vector.broadcast %9 : vector<1x32xf32> to vector<8x32xf32>
    %28 = arith.mulf %26, %27 : vector<8x32xf32>
    %29 = vector.broadcast %10 : vector<1x32xf32> to vector<8x32xf32>
    %30 = arith.addf %28, %29 : vector<8x32xf32>
    %31 = arith.truncf %30 : vector<8x32xf32> to vector<8x32xbf16>
    %c0_16 = arith.constant 0 : index
    %c0_17 = arith.constant 0 : index
    %32 = vector.load %arg7[%c0_16, %c0_17] : memref<128x32xbf16, #tpu.memory_space<vmem>>, vector<128x32xbf16>
    %cst_18 = arith.constant dense<0.000000e+00> : vector<8x128xf32>
    %33 = tpu.matmul %31, %32, %cst_18 {dimension_numbers = #tpu.dot_dimension_numbers<[1], [1], [0], [0], [0, 0, 1, 0], [], []>} : vector<8x32xbf16>, vector<128x32xbf16>, vector<8x128xf32> -> vector<8x128xf32>
    %c0_19 = arith.constant 0 : index
    %c0_20 = arith.constant 0 : index
    %34 = vector.load %arg8[%c0_19, %c0_20] : memref<1x128xf32, #tpu.memory_space<vmem>>, vector<1x128xf32>
    %35 = vector.broadcast %34 : vector<1x128xf32> to vector<8x128xf32>
    %36 = arith.addf %33, %35 : vector<8x128xf32>
    %cst_21 = arith.constant 0.000000e+00 : f32
    %37 = vector.broadcast %cst_21 : f32 to vector<8x128xf32>
    %38 = arith.maximumf %36, %37 : vector<8x128xf32>
    %39 = arith.truncf %38 : vector<8x128xf32> to vector<8x128xbf16>
    %c0_22 = arith.constant 0 : index
    %c0_23 = arith.constant 0 : index
    %40 = vector.load %arg9[%c0_22, %c0_23] : memref<32x128xbf16, #tpu.memory_space<vmem>>, vector<32x128xbf16>
    %cst_24 = arith.constant dense<0.000000e+00> : vector<8x32xf32>
    %41 = tpu.matmul %39, %40, %cst_24 {dimension_numbers = #tpu.dot_dimension_numbers<[1], [1], [0], [0], [0, 0, 1, 0], [], []>} : vector<8x128xbf16>, vector<32x128xbf16>, vector<8x32xf32> -> vector<8x32xf32>
    %c0_25 = arith.constant 0 : index
    %c0_26 = arith.constant 0 : index
    %42 = vector.load %arg10[%c0_25, %c0_26] : memref<1x32xf32, #tpu.memory_space<vmem>>, vector<1x32xf32>
    %43 = vector.broadcast %42 : vector<1x32xf32> to vector<8x32xf32>
    %44 = arith.addf %41, %43 : vector<8x32xf32>
    %45 = arith.addf %44, %30 : vector<8x32xf32>
    %c0_27 = arith.constant 0 : index
    %c0_28 = arith.constant 0 : index
    %46 = vector.load %arg11[%c0_27, %c0_28] : memref<1x32xf32, #tpu.memory_space<vmem>>, vector<1x32xf32>
    %c0_29 = arith.constant 0 : index
    %c0_30 = arith.constant 0 : index
    %47 = vector.load %arg12[%c0_29, %c0_30] : memref<1x32xf32, #tpu.memory_space<vmem>>, vector<1x32xf32>
    %cst_31 = arith.constant dense<0.000000e+00> : vector<8xf32>
    %48 = vector.multi_reduction <add>, %45, %cst_31 [1] : vector<8x32xf32> to vector<8xf32>
    %49 = vector.shape_cast %48 : vector<8xf32> to vector<8x1xf32>
    %cst_32 = arith.constant 3.200000e+01 : f32
    %50 = vector.broadcast %cst_32 : f32 to vector<8x1xf32>
    %51 = arith.divf %49, %50 : vector<8x1xf32>
    %52 = vector.broadcast %51 : vector<8x1xf32> to vector<8x32xf32>
    %53 = arith.subf %45, %52 : vector<8x32xf32>
    %54 = arith.mulf %53, %53 : vector<8x32xf32>
    %cst_33 = arith.constant dense<0.000000e+00> : vector<8xf32>
    %55 = vector.multi_reduction <add>, %54, %cst_33 [1] : vector<8x32xf32> to vector<8xf32>
    %56 = vector.shape_cast %55 : vector<8xf32> to vector<8x1xf32>
    %cst_34 = arith.constant 3.200000e+01 : f32
    %57 = vector.broadcast %cst_34 : f32 to vector<8x1xf32>
    %58 = arith.divf %56, %57 : vector<8x1xf32>
    %cst_35 = arith.constant 9.99999974E-6 : f32
    %59 = vector.broadcast %cst_35 : f32 to vector<8x1xf32>
    %60 = arith.addf %58, %59 : vector<8x1xf32>
    %61 = math.rsqrt %60 : vector<8x1xf32>
    %62 = vector.broadcast %61 : vector<8x1xf32> to vector<8x32xf32>
    %63 = arith.mulf %53, %62 : vector<8x32xf32>
    %64 = vector.broadcast %46 : vector<1x32xf32> to vector<8x32xf32>
    %65 = arith.mulf %63, %64 : vector<8x32xf32>
    %66 = vector.broadcast %47 : vector<1x32xf32> to vector<8x32xf32>
    %67 = arith.addf %65, %66 : vector<8x32xf32>
    %c0_36 = arith.constant 0 : index
    %c0_37 = arith.constant 0 : index
    %68 = vector.load %arg13[%c0_36, %c0_37] : memref<8x32xf32, #tpu.memory_space<vmem>>, vector<8x32xf32>
    tpu.vector_store %arg13[%c0_36, %c0_37], %67 {strides = array<i32>} : memref<8x32xf32, #tpu.memory_space<vmem>>, vector<8x32xf32>,
    return
  }
  func.func @transform_0(%arg0: i32) -> (i32, i32) {
    %c0_i32 = arith.constant 0 : i32
    %c0_i32_0 = arith.constant 0 : i32
    return %arg0, %c0_i32 : i32, i32
  }
  func.func @transform_1(%arg0: i32) -> (i32, i32) {
    %c0_i32 = arith.constant 0 : i32
    %c0_i32_0 = arith.constant 0 : i32
    return %arg0, %c0_i32 : i32, i32
  }
  func.func @transform_2(%arg0: i32) -> (i32, i32) {
    %c0_i32 = arith.constant 0 : i32
    %c0_i32_0 = arith.constant 0 : i32
    %c0_i32_1 = arith.constant 0 : i32
    return %c0_i32, %c0_i32_0 : i32, i32
  }
  func.func @transform_3(%arg0: i32) -> (i32, i32) {
    %c0_i32 = arith.constant 0 : i32
    %c0_i32_0 = arith.constant 0 : i32
    %c0_i32_1 = arith.constant 0 : i32
    return %c0_i32, %c0_i32_0 : i32, i32
  }
  func.func @transform_4(%arg0: i32) -> (i32, i32) {
    %c0_i32 = arith.constant 0 : i32
    %c0_i32_0 = arith.constant 0 : i32
    %c0_i32_1 = arith.constant 0 : i32
    return %c0_i32, %c0_i32_0 : i32, i32
  }
  func.func @transform_5(%arg0: i32) -> (i32, i32) {
    %c0_i32 = arith.constant 0 : i32
    %c0_i32_0 = arith.constant 0 : i32
    %c0_i32_1 = arith.constant 0 : i32
    return %c0_i32, %c0_i32_0 : i32, i32
  }
  func.func @transform_6(%arg0: i32) -> (i32, i32) {
    %c0_i32 = arith.constant 0 : i32
    %c0_i32_0 = arith.constant 0 : i32
    %c0_i32_1 = arith.constant 0 : i32
    return %c0_i32, %c0_i32_0 : i32, i32
  }
  func.func @transform_7(%arg0: i32) -> (i32, i32) {
    %c0_i32 = arith.constant 0 : i32
    %c0_i32_0 = arith.constant 0 : i32
    %c0_i32_1 = arith.constant 0 : i32
    return %c0_i32, %c0_i32_0 : i32, i32
  }
  func.func @transform_8(%arg0: i32) -> (i32, i32) {
    %c0_i32 = arith.constant 0 : i32
    %c0_i32_0 = arith.constant 0 : i32
    %c0_i32_1 = arith.constant 0 : i32
    return %c0_i32, %c0_i32_0 : i32, i32
  }
  func.func @transform_9(%arg0: i32) -> (i32, i32) {
    %c0_i32 = arith.constant 0 : i32
    %c0_i32_0 = arith.constant 0 : i32
    %c0_i32_1 = arith.constant 0 : i32
    return %c0_i32, %c0_i32_0 : i32, i32
  }
  func.func @transform_10(%arg0: i32) -> (i32, i32) {
    %c0_i32 = arith.constant 0 : i32
    %c0_i32_0 = arith.constant 0 : i32
    %c0_i32_1 = arith.constant 0 : i32
    return %c0_i32, %c0_i32_0 : i32, i32
  }
  func.func @transform_11(%arg0: i32) -> (i32, i32) {
    %c0_i32 = arith.constant 0 : i32
    %c0_i32_0 = arith.constant 0 : i32
    %c0_i32_1 = arith.constant 0 : i32
    return %c0_i32, %c0_i32_0 : i32, i32
  }
  func.func @transform_12(%arg0: i32) -> (i32, i32) {
    %c0_i32 = arith.constant 0 : i32
    %c0_i32_0 = arith.constant 0 : i32
    return %arg0, %c0_i32 : i32, i32
  }
}

</mosaic_0001>

<llo_original>
// kernel: encoder_forward.6
$region0: #{encoder_forward.6}
  #allocation0 [shape = 'u32[]', space=smem, size = 0x4, offset = 0x4, fixed_abs, tag = 'smem constant byte address 0x4 - core index']
  #allocation1 [shape = 'u32[72,128]{1,0:T(1,128)}', space=vmem, size = 0x9000, scoped, tag = 'internal scratch']
  %s0 = inlined_call_operand.vmem [shape: f32[16,32], index: 0, kind: input, shape index: {}]
  %s1 = inlined_call_operand.vmem [shape: bf16[32,32], index: 1, kind: input, shape index: {}]
  %s2 = inlined_call_operand.vmem [shape: f32[16,32], index: 2, kind: output, shape index: {}]
  %s3 = sld [smem:[#allocation0]]
  $region49: #{encoder_forward.6} parent=0
    _
  %s5 = ssub.s32 1, %s3
  %s6 = scalar_select 0, %s5, %s3
  loop: start=0, step=1, limit=4
  $region2: #{encoder_forward.6} parent=0 // loop_pre_header
    _
  $region3: #{encoder_forward.6} parent=0 // loop_header
    %s8 = sphi 0, %s12
    %p9 = scmp.ge.s32.totalorder %s8, 4
    %s15 = sphi 0, %s34
    %s16 = sphi 0, %s30
    %s17 = sphi 0, %s26
    %s18 = sphi 0, %s15
    %s19 = sphi 0, %s16
    %s20 = sphi 0, %s17
    %s21 = sphi 0, %s18
    %s22 = sphi 0, %s19
    %s23 = sphi 0, %s20
    %s39 = sphi 0, %s41
    %s42 = sphi 0, %s39
    %s43 = sphi 0, %s42
    %s59 = sphi 0, %s43
    %s67 = sphi 0, %s69
    %s70 = sphi 0, %s67
    %s71 = sphi 0, %s70
    %s87 = sphi 0, %s71
    %s95 = sphi 0, %s97
    %s98 = sphi 0, %s95
    %s99 = sphi 0, %s98
    %s115 = sphi 0, %s99
  $region4: #{encoder_forward.6} parent=0 // loop_header_branch
    %11 = sbr.rel (%p9) target = $region8
  $region5: #{encoder_forward.6} parent=0 // loop_body
    %s13 = ssub.s32 %s8, 1
    %s14 = ssub.s32 %s8, 2
    %s24 = sadd.s32 1, %s17
    %p25 = scmp.ge.s32.totalorder %s24, 1
    %s26 = scalar_select %p25, 0, %s24
    %s27 = sadd.s32 1, %s16
    %s28 = scalar_select %p25, %s27, %s16
    %p29 = scmp.ge.s32.totalorder %s28, 1
    %s30 = scalar_select %p29, 0, %s28
    %s31 = sadd.s32 1, %s15
    %s32 = scalar_select %p29, %s31, %s15
    %p33 = scmp.ge.s32.totalorder %s32, 2
    %s34 = scalar_select %p33, 0, %s32
    %s35 = ssub.s32 %s15, %s34
    %s36 = ssub.s32 %s17, %s26
    %s37 = sor.u32 %s35, %s36
    %p38 = scmp.eq.s32.totalorder %s37, 0
    %s40 = sadd.s32 %s39, 1
    %s41 = scalar_select %p38, %s39, %s40
    %p44 = pneg %p38
    %p45 = scmp.eq.s32.totalorder %s8, 1
    %p46 = por %p44, %p45
    %p47 = scmp.ne.s32.totalorder %s39, %s42
    %p48 = scmp.eq.s32.totalorder %s8, 0
    %p49 = por %p47, %p48
    %p50 = scmp.ne.s32.totalorder %s39, %s42
    %p51 = scmp.eq.s32.totalorder %s13, 1
    %p52 = por %p50, %p51
    %p53 = scmp.ne.s32.totalorder %s42, %s43
    %p54 = scmp.eq.s32.totalorder %s13, 0
    %p55 = por %p53, %p54
    %p56 = scmp.ne.s32.totalorder %s42, %s43
    %p57 = scmp.eq.s32.totalorder %s14, 1
    %p58 = por %p56, %p57
    %p60 = scmp.ne.s32.totalorder %s43, %s59
    %p61 = scmp.eq.s32.totalorder %s14, 0
    %p62 = por %p60, %p61
    %s63 = ssub.s32 %s16, %s30
    %s64 = ssub.s32 %s17, %s26
    %s65 = sor.u32 %s63, %s64
    %p66 = scmp.eq.s32.totalorder %s65, 0
    %s68 = sadd.s32 %s67, 1
    %s69 = scalar_select %p66, %s67, %s68
    %p72 = pneg %p66
    %p73 = scmp.eq.s32.totalorder %s8, 1
    %p74 = por %p72, %p73
    %p75 = scmp.ne.s32.totalorder %s67, %s70
    %p76 = scmp.eq.s32.totalorder %s8, 0
    %p77 = por %p75, %p76
    %p78 = scmp.ne.s32.totalorder %s67, %s70
    %p79 = scmp.eq.s32.totalorder %s13, 1
    %p80 = por %p78, %p79
    %p81 = scmp.ne.s32.totalorder %s70, %s71
    %p82 = scmp.eq.s32.totalorder %s13, 0
    %p83 = por %p81, %p82
    %p84 = scmp.ne.s32.totalorder %s70, %s71
    %p85 = scmp.eq.s32.totalorder %s14, 1
    %p86 = por %p84, %p85
    %p88 = scmp.ne.s32.totalorder %s71, %s87
    %p89 = scmp.eq.s32.totalorder %s14, 0
    %p90 = por %p88, %p89
    %s91 = ssub.s32 %s15, %s34
    %s92 = ssub.s32 %s16, %s30
    %s93 = sor.u32 %s91, %s92
    %p94 = scmp.eq.s32.totalorder %s93, 0
    %s96 = sadd.s32 %s95, 1
    %s97 = scalar_select %p94, %s95, %s96
    %p100 = pneg %p94
    %p101 = scmp.eq.s32.totalorder %s8, 1
    %p102 = por %p100, %p101
    %p103 = scmp.ne.s32.totalorder %s95, %s98
    %p104 = scmp.eq.s32.totalorder %s8, 0
    %p105 = por %p103, %p104
    %p106 = scmp.ne.s32.totalorder %s95, %s98
    %p107 = scmp.eq.s32.totalorder %s13, 1
    %p108 = por %p106, %p107
    %p109 = scmp.ne.s32.totalorder %s98, %s99
    %p110 = scmp.eq.s32.totalorder %s13, 0
    %p111 = por %p109, %p110
    %p112 = scmp.ne.s32.totalorder %s98, %s99
    %p113 = scmp.eq.s32.totalorder %s14, 1
    %p114 = por %p112, %p113
    %p116 = scmp.ne.s32.totalorder %s99, %s115
    %p117 = scmp.eq.s32.totalorder %s14, 0
    %p118 = por %p116, %p117
    %p119 = scmp.le.s32.totalorder 1, %s8
    %p120 = scmp.lt.s32.totalorder %s8, 3
    %p121 = pnand %p119, %p120
    %p122 = pneg %p121
    // Predicated region
    $region9: #{encoder_forward.6} parent=5 // pred_check
      _
    $region10: #{encoder_forward.6} parent=5 // pred_check_branch
      %124 = sbr.rel (%p121) target = $region12
    $region11: #{encoder_forward.6} parent=5 // pred_region
      %s125 = ssub.s32 %s8, 1
      // Predicated region
      $region13: #{encoder_forward.6} parent=11 // pred_check
        %p126 = pneg %p83
      $region14: #{encoder_forward.6} parent=11 // pred_check_branch
        %128 = sbr.rel (%p126) target = $region16
      $region15: #{encoder_forward.6} parent=11 // pred_region
        %s129 = smul.u32 4, %s19
        %p130 = scmp.lt.s32.totalorder %s129, 3
        %s131 = scalar_select %p130, %s129, 3
        %p132 = scmp.lt.s32.totalorder %s20, 0
        %s133 = scalar_select %p132, %s20, 0
        %s134 = sadd.s32 %s133, %s131
        %s135 = smul.addr %s134, 4
        %s136 = scalar_lea.vmem %s1, %s135
        %s137 = smul.u32 4, %s19
      $region16: #{encoder_forward.6} parent=11 // pred_fallthru
        _
    $region12: #{encoder_forward.6} parent=5 // pred_fallthru
      _
    %p138 = scmp.lt.s32.totalorder %s8, 2
    // Predicated region
    $region17: #{encoder_forward.6} parent=5 // pred_check
      %p139 = pneg %p138
    $region18: #{encoder_forward.6} parent=5 // pred_check_branch
      %141 = sbr.rel (%p139) target = $region20
    $region19: #{encoder_forward.6} parent=5 // pred_region
      // Predicated region
      $region21: #{encoder_forward.6} parent=19 // pred_check
        %p142 = pneg %p49
      $region22: #{encoder_forward.6} parent=19 // pred_check_branch
        %144 = sbr.rel (%p142) target = $region24
      $region23: #{encoder_forward.6} parent=19 // pred_region
        %p145 = scmp.lt.s32.totalorder %s15, 1
        %s146 = scalar_select %p145, %s15, 1
        %p147 = scmp.lt.s32.totalorder %s17, 0
        %s148 = scalar_select %p147, %s17, 0
        %s149 = sadd.s32 %s148, %s146
        %s150 = smul.addr %s149, 8
        %s151 = scalar_lea.vmem %s0, %s150
      $region24: #{encoder_forward.6} parent=19 // pred_fallthru
        _
    $region20: #{encoder_forward.6} parent=5 // pred_fallthru
      _
    %p152 = scmp.le.s32.totalorder 1, %s8
    %p153 = scmp.lt.s32.totalorder %s8, 3
    %p154 = pnand %p152, %p153
    %p155 = pneg %p154
    // Predicated region
    $region25: #{encoder_forward.6} parent=5 // pred_check
      _
    $region26: #{encoder_forward.6} parent=5 // pred_check_branch
      %157 = sbr.rel (%p154) target = $region28
    $region27: #{encoder_forward.6} parent=5 // pred_region
      %s158 = ssub.s32 %s8, 1
      %p159 = scmp.lt.s32.totalorder %s18, 1
      %s160 = scalar_select %p159, %s18, 1
      %p161 = scmp.lt.s32.totalorder %s20, 0
      %s162 = scalar_select %p161, %s20, 0
      %s163 = sadd.s32 %s162, %s160
      %s164 = smul.addr %s163, 8
      %s165 = scalar_lea.vmem %s0, %s164
      %p166 = pneg %p55
      %p167 = pneg %p52
      %s168 = smul.u32 4, %s19
      %p169 = scmp.lt.s32.totalorder %s168, 3
      %s170 = scalar_select %p169, %s168, 3
      %p171 = scmp.lt.s32.totalorder %s20, 0
      %s172 = scalar_select %p171, %s20, 0
      %s173 = sadd.s32 %s172, %s170
      %s174 = smul.addr %s173, 4
      %s175 = scalar_lea.vmem %s1, %s174
      %p176 = pneg %p83
      %p177 = pneg %p80
      %p178 = pneg %p111
      %p179 = pneg %p108
      %p180 = scmp.lt.s32.totalorder %s18, 1
      %s181 = scalar_select %p180, %s18, 1
      %p182 = scmp.lt.s32.totalorder %s19, 0
      %s183 = scalar_select %p182, %s19, 0
      %s184 = sadd.s32 %s183, %s181
      %s185 = smul.addr %s184, 8
      %s186 = scalar_lea.vmem %s2, %s185
      %p187 = scmp.lt.s32.totalorder %s18, 1
      %s188 = scalar_select %p187, %s18, 1
      %p189 = scmp.lt.s32.totalorder %s20, 0
      %s190 = scalar_select %p189, %s20, 0
      %s191 = sadd.s32 %s190, %s188
      %s192 = smul.addr %s191, 8
      %s193 = scalar_lea.vmem %s0, %s192
      %s194 = smul.u32 4, %s19
      %p195 = scmp.lt.s32.totalorder %s194, 3
      %s196 = scalar_select %p195, %s194, 3
      %p197 = scmp.lt.s32.totalorder %s20, 0
      %s198 = scalar_select %p197, %s20, 0
      %s199 = sadd.s32 %s198, %s196
      %s200 = smul.addr %s199, 4
      %s201 = scalar_lea.vmem %s1, %s200
      %s202 = smul.u32 4, %s19
      %p203 = scmp.lt.s32.totalorder %s18, 1
      %s204 = scalar_select %p203, %s18, 1
      %p205 = scmp.lt.s32.totalorder %s19, 0
      %s206 = scalar_select %p205, %s19, 0
      %s207 = sadd.s32 %s206, %s204
      %s208 = smul.addr %s207, 8
      %s209 = scalar_lea.vmem %s2, %s208
      %v211 = vld [vmem:[%s193] sm:$0xff]
      %v212 = vpack.c.bf16 %v211, %v211
      %v213 = vld [vmem:[%s201] sm:$0xf]
      %v214 = vld [vmem:[%s201 + $0x4] sm:$0xf]
      %v215 = vld [vmem:[%s201 + $0x8] sm:$0xf]
      %v216 = vld [vmem:[%s201 + $0xc] sm:$0xf]
      %v221 = vunpack.c.l.b16 %v213
      %v222 = vunpack.c.l.b16 %v214
      %v223 = vunpack.c.l.b16 %v215
      %v224 = vunpack.c.l.b16 %v216
      %v225 = vpack.c.b16 %v222, %v221
      %v226 = vpack.c.b16 %v224, %v223
      %vm227 = vcmask 261120
      %v229 = vsel %vm227, %v212, 0
      %v232 = vsel %vm227, %v225, 0
      %v235 = vsel %vm227, %v226, 0
      %237 = vmatpush.bf16.xpose.msra.mxu0 0
      %238 = vmatpush.bf16.xpose.msra.mxu0 0
      %239 = vmatpush.bf16.xpose.msra.mxu0 0
      %240 = vmatpush.bf16.xpose.msra.mxu0 0
      %241 = vmatpush.bf16.xpose.msra.mxu0 0
      %242 = vmatpush.bf16.xpose.msra.mxu0 0
      %243 = vmatpush.bf16.xpose.msra.mxu0 %v235
      %244 = vmatpush.bf16.xpose.msra.mxu0 %v232
      %245 = vmatmul.bf16.gmra.mxu0 %v229
      %v246 = vpop.f32.mrf.mxu0
      %v247 = vadd.f32 0.0, %v246
      %v248 = vpop.f32.mrf.mxu0
      %249 = vdwg.mxu0
      %p250 = scmp.eq.s32.totalorder %s20, 0
      // Predicated region
      $region29: #{encoder_forward.6} parent=27 // pred_check
        %p251 = pneg %p250
      $region30: #{encoder_forward.6} parent=27 // pred_check_branch
        %253 = sbr.rel (%p251) target = $region32
      $region31: #{encoder_forward.6} parent=27 // pred_region
        %254 = vst.msk [vmem:[%s209] sm:$0xff] %vm227, %v247
      $region32: #{encoder_forward.6} parent=27 // pred_fallthru
        _
      %p255 = scmp.gt.s32.totalorder %s20, 0
      // Predicated region
      $region33: #{encoder_forward.6} parent=27 // pred_check
        %p256 = pneg %p255
      $region34: #{encoder_forward.6} parent=27 // pred_check_branch
        %258 = sbr.rel (%p256) target = $region36
      $region35: #{encoder_forward.6} parent=27 // pred_region
        %v259 = vld [vmem:[%s209] sm:$0xff]
        %v260 = vadd.f32 %v259, %v247
        %261 = vst.msk [vmem:[%s209] sm:$0xff] %vm227, %v260
      $region36: #{encoder_forward.6} parent=27 // pred_fallthru
        _
      %p262 = scmp.lt.s32.totalorder %s18, 1
      %s263 = scalar_select %p262, %s18, 1
      %p264 = scmp.lt.s32.totalorder %s19, 0
      %s265 = scalar_select %p264, %s19, 0
      %s266 = sadd.s32 %s265, %s263
      %s267 = smul.addr %s266, 8
      %s268 = scalar_lea.vmem %s2, %s267
      // Predicated region
      $region37: #{encoder_forward.6} parent=27 // pred_check
        %p269 = pneg %p108
      $region38: #{encoder_forward.6} parent=27 // pred_check_branch
        %271 = sbr.rel (%p269) target = $region40
      $region39: #{encoder_forward.6} parent=27 // pred_region
        _
      $region40: #{encoder_forward.6} parent=27 // pred_fallthru
        _
    $region28: #{encoder_forward.6} parent=5 // pred_fallthru
      _
    %p272 = scmp.le.s32.totalorder 2, %s8
    // Predicated region
    $region41: #{encoder_forward.6} parent=5 // pred_check
      %p273 = pneg %p272
    $region42: #{encoder_forward.6} parent=5 // pred_check_branch
      %275 = sbr.rel (%p273) target = $region44
    $region43: #{encoder_forward.6} parent=5 // pred_region
      %s276 = ssub.s32 %s8, 2
      // Predicated region
      $region45: #{encoder_forward.6} parent=43 // pred_check
        %p277 = pneg %p114
      $region46: #{encoder_forward.6} parent=43 // pred_check_branch
        %279 = sbr.rel (%p277) target = $region48
      $region47: #{encoder_forward.6} parent=43 // pred_region
        %p280 = scmp.lt.s32.totalorder %s21, 1
        %s281 = scalar_select %p280, %s21, 1
        %p282 = scmp.lt.s32.totalorder %s22, 0
        %s283 = scalar_select %p282, %s22, 0
        %s284 = sadd.s32 %s283, %s281
        %s285 = smul.addr %s284, 8
        %s286 = scalar_lea.vmem %s2, %s285
      $region48: #{encoder_forward.6} parent=43 // pred_fallthru
        _
    $region44: #{encoder_forward.6} parent=5 // pred_fallthru
      _
  $region6: #{encoder_forward.6} parent=0 // loop_footer
    %s12 = sadd.s32 1, %s8
  $region7: #{encoder_forward.6} parent=0 // loop_footer_branch
    %7 = sbr.rel target = $region3
  $region8: #{encoder_forward.6} parent=0 // loop_exit
    _

// kernel: encoder_forward.7
$region0: #{encoder_forward.7}
  #allocation0 [shape = 'u32[]', space=smem, size = 0x4, offset = 0x4, fixed_abs, tag = 'smem constant byte address 0x4 - core index']
  #allocation1 [shape = 'u32[72,128]{1,0:T(1,128)}', space=vmem, size = 0x9000, scoped, tag = 'internal scratch']
  %s0 = inlined_call_operand.vmem [shape: f32[2,4,8,8], index: 0, kind: input, shape index: {}]
  %s1 = inlined_call_operand.vmem [shape: f32[2,4,8,8], index: 1, kind: output, shape index: {}]
  %s2 = sld [smem:[#allocation0]]
  $region37: #{encoder_forward.7} parent=0
    _
  %s4 = ssub.s32 1, %s2
  %s5 = scalar_select 0, %s4, %s2
  loop: start=0, step=1, limit=4
  $region2: #{encoder_forward.7} parent=0 // loop_pre_header
    _
  $region3: #{encoder_forward.7} parent=0 // loop_header
    %s7 = sphi 0, %s11
    %p8 = scmp.ge.s32.totalorder %s7, 4
    %s14 = sphi 0, %s26
    %s15 = sphi 0, %s22
    %s16 = sphi 0, %s14
    %s17 = sphi 0, %s15
    %s18 = sphi 0, %s16
    %s19 = sphi 0, %s17
    %s31 = sphi 0, %s33
    %s34 = sphi 0, %s31
    %s35 = sphi 0, %s34
    %s51 = sphi 0, %s35
    %s59 = sphi 0, %s61
    %s62 = sphi 0, %s59
    %s63 = sphi 0, %s62
    %s79 = sphi 0, %s63
  $region4: #{encoder_forward.7} parent=0 // loop_header_branch
    %10 = sbr.rel (%p8) target = $region8
  $region5: #{encoder_forward.7} parent=0 // loop_body
    %s12 = ssub.s32 %s7, 1
    %s13 = ssub.s32 %s7, 2
    %s20 = sadd.s32 1, %s15
    %p21 = scmp.ge.s32.totalorder %s20, 1
    %s22 = scalar_select %p21, 0, %s20
    %s23 = sadd.s32 1, %s14
    %s24 = scalar_select %p21, %s23, %s14
    %p25 = scmp.ge.s32.totalorder %s24, 2
    %s26 = scalar_select %p25, 0, %s24
    %s27 = ssub.s32 %s14, %s26
    %s28 = ssub.s32 %s15, %s22
    %s29 = sor.u32 %s27, %s28
    %p30 = scmp.eq.s32.totalorder %s29, 0
    %s32 = sadd.s32 %s31, 1
    %s33 = scalar_select %p30, %s31, %s32
    %p36 = pneg %p30
    %p37 = scmp.eq.s32.totalorder %s7, 1
    %p38 = por %p36, %p37
    %p39 = scmp.ne.s32.totalorder %s31, %s34
    %p40 = scmp.eq.s32.totalorder %s7, 0
    %p41 = por %p39, %p40
    %p42 = scmp.ne.s32.totalorder %s31, %s34
    %p43 = scmp.eq.s32.totalorder %s12, 1
    %p44 = por %p42, %p43
    %p45 = scmp.ne.s32.totalorder %s34, %s35
    %p46 = scmp.eq.s32.totalorder %s12, 0
    %p47 = por %p45, %p46
    %p48 = scmp.ne.s32.totalorder %s34, %s35
    %p49 = scmp.eq.s32.totalorder %s13, 1
    %p50 = por %p48, %p49
    %p52 = scmp.ne.s32.totalorder %s35, %s51
    %p53 = scmp.eq.s32.totalorder %s13, 0
    %p54 = por %p52, %p53
    %s55 = ssub.s32 %s14, %s26
    %s56 = ssub.s32 %s15, %s22
    %s57 = sor.u32 %s55, %s56
    %p58 = scmp.eq.s32.totalorder %s57, 0
    %s60 = sadd.s32 %s59, 1
    %s61 = scalar_select %p58, %s59, %s60
    %p64 = pneg %p58
    %p65 = scmp.eq.s32.totalorder %s7, 1
    %p66 = por %p64, %p65
    %p67 = scmp.ne.s32.totalorder %s59, %s62
    %p68 = scmp.eq.s32.totalorder %s7, 0
    %p69 = por %p67, %p68
    %p70 = scmp.ne.s32.totalorder %s59, %s62
    %p71 = scmp.eq.s32.totalorder %s12, 1
    %p72 = por %p70, %p71
    %p73 = scmp.ne.s32.totalorder %s62, %s63
    %p74 = scmp.eq.s32.totalorder %s12, 0
    %p75 = por %p73, %p74
    %p76 = scmp.ne.s32.totalorder %s62, %s63
    %p77 = scmp.eq.s32.totalorder %s13, 1
    %p78 = por %p76, %p77
    %p80 = scmp.ne.s32.totalorder %s63, %s79
    %p81 = scmp.eq.s32.totalorder %s13, 0
    %p82 = por %p80, %p81
    %p83 = scmp.le.s32.totalorder 1, %s7
    %p84 = scmp.lt.s32.totalorder %s7, 3
    %p85 = pnand %p83, %p84
    %p86 = pneg %p85
    // Predicated region
    $region9: #{encoder_forward.7} parent=5 // pred_check
      _
    $region10: #{encoder_forward.7} parent=5 // pred_check_branch
      %88 = sbr.rel (%p85) target = $region12
    $region11: #{encoder_forward.7} parent=5 // pred_region
      %s89 = ssub.s32 %s7, 1
    $region12: #{encoder_forward.7} parent=5 // pred_fallthru
      _
    %p90 = scmp.lt.s32.totalorder %s7, 2
    // Predicated region
    $region13: #{encoder_forward.7} parent=5 // pred_check
      %p91 = pneg %p90
    $region14: #{encoder_forward.7} parent=5 // pred_check_branch
      %93 = sbr.rel (%p91) target = $region16
    $region15: #{encoder_forward.7} parent=5 // pred_region
      // Predicated region
      $region17: #{encoder_forward.7} parent=15 // pred_check
        %p94 = pneg %p41
      $region18: #{encoder_forward.7} parent=15 // pred_check_branch
        %96 = sbr.rel (%p94) target = $region20
      $region19: #{encoder_forward.7} parent=15 // pred_region
        %s97 = smul.u32 4, %s15
        %p98 = scmp.lt.s32.totalorder %s14, 1
        %s99 = scalar_select %p98, %s14, 1
        %p100 = scmp.lt.s32.totalorder %s97, 3
        %s101 = scalar_select %p100, %s97, 3
        %s102 = smul.addr %s99, 4
        %s103 = sadd.s32 %s101, %s102
        %s104 = smul.addr %s103, 8
        %s105 = scalar_lea.vmem %s0, %s104
        %s106 = smul.u32 4, %s15
      $region20: #{encoder_forward.7} parent=15 // pred_fallthru
        _
    $region16: #{encoder_forward.7} parent=5 // pred_fallthru
      _
    %p107 = scmp.le.s32.totalorder 1, %s7
    %p108 = scmp.lt.s32.totalorder %s7, 3
    %p109 = pnand %p107, %p108
    %p110 = pneg %p109
    // Predicated region
    $region21: #{encoder_forward.7} parent=5 // pred_check
      _
    $region22: #{encoder_forward.7} parent=5 // pred_check_branch
      %112 = sbr.rel (%p109) target = $region24
    $region23: #{encoder_forward.7} parent=5 // pred_region
      %s113 = ssub.s32 %s7, 1
      %s114 = smul.u32 4, %s17
      %p115 = scmp.lt.s32.totalorder %s16, 1
      %s116 = scalar_select %p115, %s16, 1
      %p117 = scmp.lt.s32.totalorder %s114, 3
      %s118 = scalar_select %p117, %s114, 3
      %s119 = smul.addr %s116, 4
      %s120 = sadd.s32 %s118, %s119
      %s121 = smul.addr %s120, 8
      %s122 = scalar_lea.vmem %s0, %s121
      %p123 = pneg %p47
      %p124 = pneg %p44
      %p125 = pneg %p75
      %p126 = pneg %p72
      %s127 = smul.u32 4, %s17
      %p128 = scmp.lt.s32.totalorder %s16, 1
      %s129 = scalar_select %p128, %s16, 1
      %p130 = scmp.lt.s32.totalorder %s127, 3
      %s131 = scalar_select %p130, %s127, 3
      %s132 = smul.addr %s129, 4
      %s133 = sadd.s32 %s131, %s132
      %s134 = smul.addr %s133, 8
      %s135 = scalar_lea.vmem %s1, %s134
      %s136 = smul.u32 4, %s17
      %p137 = scmp.lt.s32.totalorder %s16, 1
      %s138 = scalar_select %p137, %s16, 1
      %p139 = scmp.lt.s32.totalorder %s136, 3
      %s140 = scalar_select %p139, %s136, 3
      %s141 = smul.addr %s138, 4
      %s142 = sadd.s32 %s140, %s141
      %s143 = smul.addr %s142, 8
      %s144 = scalar_lea.vmem %s0, %s143
      %s145 = smul.u32 4, %s17
      %s146 = smul.u32 4, %s17
      %p147 = scmp.lt.s32.totalorder %s16, 1
      %s148 = scalar_select %p147, %s16, 1
      %p149 = scmp.lt.s32.totalorder %s146, 3
      %s150 = scalar_select %p149, %s146, 3
      %s151 = smul.addr %s148, 4
      %s152 = sadd.s32 %s150, %s151
      %s153 = smul.addr %s152, 8
      %s154 = scalar_lea.vmem %s1, %s153
      %s155 = smul.u32 4, %s17
      %v157 = vld [vmem:[%s144] sm:$0xff]
      %v158 = vld [vmem:[%s144 + $0x8] sm:$0xff]
      %v159 = vld [vmem:[%s144 + $0x10] sm:$0xff]
      %v160 = vld [vmem:[%s144 + $0x18] sm:$0xff]
      %v161 = vmul.f32 %v157, 0.35355338
      %v162 = vmul.f32 %v158, 0.35355338
      %v163 = vmul.f32 %v159, 0.35355338
      %v164 = vmul.f32 %v160, 0.35355338
      %v165 = vpack.c.bf16 %v161, %v161
      %v166 = vpack.c.bf16 %v162, %v162
      %v167 = vpack.c.bf16 %v163, %v163
      %v168 = vpack.c.bf16 %v164, %v164
      %v169 = vpack.c.bf16 %v157, %v157
      %v170 = vpack.c.bf16 %v158, %v158
      %v171 = vpack.c.bf16 %v159, %v159
      %v172 = vpack.c.bf16 %v160, %v160
      %vm173 = vcmask 64512
      %v175 = vsel %vm173, %v165, 0
      %v178 = vsel %vm173, %v169, 0
      %180 = vmatpush.bf16.xpose.msra.mxu0 0
      %181 = vmatpush.bf16.xpose.msra.mxu0 0
      %182 = vmatpush.bf16.xpose.msra.mxu0 0
      %183 = vmatpush.bf16.xpose.msra.mxu0 0
      %184 = vmatpush.bf16.xpose.msra.mxu0 0
      %185 = vmatpush.bf16.xpose.msra.mxu0 0
      %186 = vmatpush.bf16.xpose.msra.mxu0 0
      %187 = vmatpush.bf16.xpose.msra.mxu0 %v178
      %188 = vmatmul.bf16.gmra.mxu0 %v175
      %v189 = vpop.f32.mrf.mxu0
      %v190 = vadd.f32 0.0, %v189
      %v191 = vpop.f32.mrf.mxu0
      %192 = vdwg.mxu0
      %v194 = vsel %vm173, %v166, 0
      %v197 = vsel %vm173, %v170, 0
      %199 = vmatpush.bf16.xpose.msra.mxu0 0
      %200 = vmatpush.bf16.xpose.msra.mxu0 0
      %201 = vmatpush.bf16.xpose.msra.mxu0 0
      %202 = vmatpush.bf16.xpose.msra.mxu0 0
      %203 = vmatpush.bf16.xpose.msra.mxu0 0
      %204 = vmatpush.bf16.xpose.msra.mxu0 0
      %205 = vmatpush.bf16.xpose.msra.mxu0 0
      %206 = vmatpush.bf16.xpose.msra.mxu0 %v197
      %207 = vmatmul.bf16.gmra.mxu0 %v194
      %v208 = vpop.f32.mrf.mxu0
      %v209 = vadd.f32 0.0, %v208
      %v210 = vpop.f32.mrf.mxu0
      %211 = vdwg.mxu0
      %v213 = vsel %vm173, %v167, 0
      %v216 = vsel %vm173, %v171, 0
      %218 = vmatpush.bf16.xpose.msra.mxu0 0
      %219 = vmatpush.bf16.xpose.msra.mxu0 0
      %220 = vmatpush.bf16.xpose.msra.mxu0 0
      %221 = vmatpush.bf16.xpose.msra.mxu0 0
      %222 = vmatpush.bf16.xpose.msra.mxu0 0
      %223 = vmatpush.bf16.xpose.msra.mxu0 0
      %224 = vmatpush.bf16.xpose.msra.mxu0 0
      %225 = vmatpush.bf16.xpose.msra.mxu0 %v216
      %226 = vmatmul.bf16.gmra.mxu0 %v213
      %v227 = vpop.f32.mrf.mxu0
      %v228 = vadd.f32 0.0, %v227
      %v229 = vpop.f32.mrf.mxu0
      %230 = vdwg.mxu0
      %v232 = vsel %vm173, %v168, 0
      %v235 = vsel %vm173, %v172, 0
      %237 = vmatpush.bf16.xpose.msra.mxu0 0
      %238 = vmatpush.bf16.xpose.msra.mxu0 0
      %239 = vmatpush.bf16.xpose.msra.mxu0 0
      %240 = vmatpush.bf16.xpose.msra.mxu0 0
      %241 = vmatpush.bf16.xpose.msra.mxu0 0
      %242 = vmatpush.bf16.xpose.msra.mxu0 0
      %243 = vmatpush.bf16.xpose.msra.mxu0 0
      %244 = vmatpush.bf16.xpose.msra.mxu0 %v235
      %245 = vmatmul.bf16.gmra.mxu0 %v232
      %v246 = vpop.f32.mrf.mxu0
      %v247 = vadd.f32 0.0, %v246
      %v248 = vpop.f32.mrf.mxu0
      %249 = vdwg.mxu0
      %v250 = vsel %vm173, %v190, -inf
      %251 = vmax.xlane.f32.xlu0 %v250
      %v252 = vpop.xlane.xlu0 %251
      %v253 = vsel %vm173, %v209, -inf
      %254 = vmax.xlane.f32.xlu0 %v253
      %v255 = vpop.xlane.xlu0 %254
      %v256 = vsel %vm173, %v228, -inf
      %257 = vmax.xlane.f32.xlu0 %v256
      %v258 = vpop.xlane.xlu0 %257
      %v259 = vsel %vm173, %v247, -inf
      %260 = vmax.xlane.f32.xlu0 %v259
      %v261 = vpop.xlane.xlu0 %260
      %v262 = vsub.f32 %v190, %v252
      %v263 = vsub.f32 %v209, %v255
      %v264 = vsub.f32 %v228, %v258
      %v265 = vsub.f32 %v247, %v261
      %v266 = vmul.f32 %v262, 1.442695
      %v267 = vpow.pop %v266
      %v268 = vmul.f32 %v263, 1.442695
      %v269 = vpow.pop %v268
      %v270 = vmul.f32 %v264, 1.442695
      %v271 = vpow.pop %v270
      %v272 = vmul.f32 %v265, 1.442695
      %v273 = vpow.pop %v272
      %v274 = vsel %vm173, %v267, 0.0
      %275 = vadd.xlane.f32.xlu0 %v274
      %v276 = vpop.xlane.xlu0 %275
      %v277 = vsel %vm173, %v269, 0.0
      %278 = vadd.xlane.f32.xlu0 %v277
      %v279 = vpop.xlane.xlu0 %278
      %v280 = vsel %vm173, %v271, 0.0
      %281 = vadd.xlane.f32.xlu0 %v280
      %v282 = vpop.xlane.xlu0 %281
      %v283 = vsel %vm173, %v273, 0.0
      %284 = vadd.xlane.f32.xlu0 %v283
      %v285 = vpop.xlane.xlu0 %284
      %v286 = vrcp.pop %v276
      %v287 = vmul.f32 %v276, %v286
      %v288 = vsub.f32 1.0, %v287
      %v289 = vmul.f32 %v286, %v288
      %v290 = vadd.f32 %v286, %v289
      %vm291 = vweird.f32 %v276
      %vm292 = vweird.f32 %v286
      %vm293 = vmor %vm291, %vm292
      %v294 = vsel %vm293, %v286, %v290
      %v295 = vand.u32 2147483647, %v276
      %vm296 = vcmp.eq.f32.partialorder %v295, 8.507059e+37
      %v297 = vand.u32 %v276, 2147483648
      %v298 = vor.u32 1.1754944e-38, %v297
      %v299 = vsel %vm296, %v298, %v294
      %v300 = vmul.f32 %v267, %v299
      %v301 = vrcp.pop %v279
      %v302 = vmul.f32 %v279, %v301
      %v303 = vsub.f32 1.0, %v302
      %v304 = vmul.f32 %v301, %v303
      %v305 = vadd.f32 %v301, %v304
      %vm306 = vweird.f32 %v279
      %vm307 = vweird.f32 %v301
      %vm308 = vmor %vm306, %vm307
      %v309 = vsel %vm308, %v301, %v305
      %v310 = vand.u32 2147483647, %v279
      %vm311 = vcmp.eq.f32.partialorder %v310, 8.507059e+37
      %v312 = vand.u32 %v279, 2147483648
      %v313 = vor.u32 1.1754944e-38, %v312
      %v314 = vsel %vm311, %v313, %v309
      %v315 = vmul.f32 %v269, %v314
      %v316 = vrcp.pop %v282
      %v317 = vmul.f32 %v282, %v316
      %v318 = vsub.f32 1.0, %v317
      %v319 = vmul.f32 %v316, %v318
      %v320 = vadd.f32 %v316, %v319
      %vm321 = vweird.f32 %v282
      %vm322 = vweird.f32 %v316
      %vm323 = vmor %vm321, %vm322
      %v324 = vsel %vm323, %v316, %v320
      %v325 = vand.u32 2147483647, %v282
      %vm326 = vcmp.eq.f32.partialorder %v325, 8.507059e+37
      %v327 = vand.u32 %v282, 2147483648
      %v328 = vor.u32 1.1754944e-38, %v327
      %v329 = vsel %vm326, %v328, %v324
      %v330 = vmul.f32 %v271, %v329
      %v331 = vrcp.pop %v285
      %v332 = vmul.f32 %v285, %v331
      %v333 = vsub.f32 1.0, %v332
      %v334 = vmul.f32 %v331, %v333
      %v335 = vadd.f32 %v331, %v334
      %vm336 = vweird.f32 %v285
      %vm337 = vweird.f32 %v331
      %vm338 = vmor %vm336, %vm337
      %v339 = vsel %vm338, %v331, %v335
      %v340 = vand.u32 2147483647, %v285
      %vm341 = vcmp.eq.f32.partialorder %v340, 8.507059e+37
      %v342 = vand.u32 %v285, 2147483648
      %v343 = vor.u32 1.1754944e-38, %v342
      %v344 = vsel %vm341, %v343, %v339
      %v345 = vmul.f32 %v273, %v344
      %v346 = vpack.c.bf16 %v300, %v300
      %v347 = vpack.c.bf16 %v315, %v315
      %v348 = vpack.c.bf16 %v330, %v330
      %v349 = vpack.c.bf16 %v345, %v345
      %v351 = vsel %vm173, %v346, 0
      %vm353 = vcmask 1043456
      %v354 = vsel %vm353, %v169, 0
      %356 = vmatpush.bf16.msra.mxu0 0
      %357 = vmatpush.bf16.msra.mxu0 0
      %358 = vmatpush.bf16.msra.mxu0 0
      %359 = vmatpush.bf16.msra.mxu0 0
      %360 = vmatpush.bf16.msra.mxu0 0
      %361 = vmatpush.bf16.msra.mxu0 0
      %362 = vmatpush.bf16.msra.mxu0 0
      %363 = vmatpush.bf16.msra.mxu0 %v354
      %364 = vmatmul.bf16.gmra.mxu0 %v351
      %v365 = vpop.f32.mrf.mxu0
      %v366 = vadd.f32 0.0, %v365
      %v367 = vpop.f32.mrf.mxu0
      %368 = vdwg.mxu0
      %v370 = vsel %vm173, %v347, 0
      %v372 = vsel %vm353, %v170, 0
      %374 = vmatpush.bf16.msra.mxu0 0
      %375 = vmatpush.bf16.msra.mxu0 0
      %376 = vmatpush.bf16.msra.mxu0 0
      %377 = vmatpush.bf16.msra.mxu0 0
      %378 = vmatpush.bf16.msra.mxu0 0
      %379 = vmatpush.bf16.msra.mxu0 0
      %380 = vmatpush.bf16.msra.mxu0 0
      %381 = vmatpush.bf16.msra.mxu0 %v372
      %382 = vmatmul.bf16.gmra.mxu0 %v370
      %v383 = vpop.f32.mrf.mxu0
      %v384 = vadd.f32 0.0, %v383
      %v385 = vpop.f32.mrf.mxu0
      %386 = vdwg.mxu0
      %v388 = vsel %vm173, %v348, 0
      %v390 = vsel %vm353, %v171, 0
      %392 = vmatpush.bf16.msra.mxu0 0
      %393 = vmatpush.bf16.msra.mxu0 0
      %394 = vmatpush.bf16.msra.mxu0 0
      %395 = vmatpush.bf16.msra.mxu0 0
      %396 = vmatpush.bf16.msra.mxu0 0
      %397 = vmatpush.bf16.msra.mxu0 0
      %398 = vmatpush.bf16.msra.mxu0 0
      %399 = vmatpush.bf16.msra.mxu0 %v390
      %400 = vmatmul.bf16.gmra.mxu0 %v388
      %v401 = vpop.f32.mrf.mxu0
      %v402 = vadd.f32 0.0, %v401
      %v403 = vpop.f32.mrf.mxu0
      %404 = vdwg.mxu0
      %v406 = vsel %vm173, %v349, 0
      %v408 = vsel %vm353, %v172, 0
      %410 = vmatpush.bf16.msra.mxu0 0
      %411 = vmatpush.bf16.msra.mxu0 0
      %412 = vmatpush.bf16.msra.mxu0 0
      %413 = vmatpush.bf16.msra.mxu0 0
      %414 = vmatpush.bf16.msra.mxu0 0
      %415 = vmatpush.bf16.msra.mxu0 0
      %416 = vmatpush.bf16.msra.mxu0 0
      %417 = vmatpush.bf16.msra.mxu0 %v408
      %418 = vmatmul.bf16.gmra.mxu0 %v406
      %v419 = vpop.f32.mrf.mxu0
      %v420 = vadd.f32 0.0, %v419
      %v421 = vpop.f32.mrf.mxu0
      %422 = vdwg.mxu0
      %423 = vst.msk [vmem:[%s154] sm:$0xff] %vm173, %v366
      %424 = vst.msk [vmem:[%s154 + $0x8] sm:$0xff] %vm173, %v384
      %425 = vst.msk [vmem:[%s154 + $0x10] sm:$0xff] %vm173, %v402
      %426 = vst.msk [vmem:[%s154 + $0x18] sm:$0xff] %vm173, %v420
      %s427 = smul.u32 4, %s17
      %p428 = scmp.lt.s32.totalorder %s16, 1
      %s429 = scalar_select %p428, %s16, 1
      %p430 = scmp.lt.s32.totalorder %s427, 3
      %s431 = scalar_select %p430, %s427, 3
      %s432 = smul.addr %s429, 4
      %s433 = sadd.s32 %s431, %s432
      %s434 = smul.addr %s433, 8
      %s435 = scalar_lea.vmem %s1, %s434
      // Predicated region
      $region25: #{encoder_forward.7} parent=23 // pred_check
        %p436 = pneg %p72
      $region26: #{encoder_forward.7} parent=23 // pred_check_branch
        %438 = sbr.rel (%p436) target = $region28
      $region27: #{encoder_forward.7} parent=23 // pred_region
        %s439 = smul.u32 4, %s17
      $region28: #{encoder_forward.7} parent=23 // pred_fallthru
        _
    $region24: #{encoder_forward.7} parent=5 // pred_fallthru
      _
    %p440 = scmp.le.s32.totalorder 2, %s7
    // Predicated region
    $region29: #{encoder_forward.7} parent=5 // pred_check
      %p441 = pneg %p440
    $region30: #{encoder_forward.7} parent=5 // pred_check_branch
      %443 = sbr.rel (%p441) target = $region32
    $region31: #{encoder_forward.7} parent=5 // pred_region
      %s444 = ssub.s32 %s7, 2
      // Predicated region
      $region33: #{encoder_forward.7} parent=31 // pred_check
        %p445 = pneg %p78
      $region34: #{encoder_forward.7} parent=31 // pred_check_branch
        %447 = sbr.rel (%p445) target = $region36
      $region35: #{encoder_forward.7} parent=31 // pred_region
        %s448 = smul.u32 4, %s19
        %p449 = scmp.lt.s32.totalorder %s18, 1
        %s450 = scalar_select %p449, %s18, 1
        %p451 = scmp.lt.s32.totalorder %s448, 3
        %s452 = scalar_select %p451, %s448, 3
        %s453 = smul.addr %s450, 4
        %s454 = sadd.s32 %s452, %s453
        %s455 = smul.addr %s454, 8
        %s456 = scalar_lea.vmem %s1, %s455
      $region36: #{encoder_forward.7} parent=31 // pred_fallthru
        _
    $region32: #{encoder_forward.7} parent=5 // pred_fallthru
      _
  $region6: #{encoder_forward.7} parent=0 // loop_footer
    %s11 = sadd.s32 1, %s7
  $region7: #{encoder_forward.7} parent=0 // loop_footer_branch
    %6 = sbr.rel target = $region3
  $region8: #{encoder_forward.7} parent=0 // loop_exit
    _

// kernel: encoder_forward.8
$region0: #{encoder_forward.8}
  #allocation0 [shape = 'u32[]', space=smem, size = 0x4, offset = 0x4, fixed_abs, tag = 'smem constant byte address 0x4 - core index']
  #allocation1 [shape = 'u32[72,128]{1,0:T(1,128)}', space=vmem, size = 0x9000, scoped, tag = 'internal scratch']
  %s0 = inlined_call_operand.vmem [shape: f32[16,32], index: 0, kind: input, shape index: {}]
  %s1 = inlined_call_operand.vmem [shape: f32[16,32], index: 1, kind: input, shape index: {}]
  %s2 = inlined_call_operand.vmem [shape: bf16[32,32], index: 2, kind: input, shape index: {}]
  %s3 = inlined_call_operand.vmem [shape: f32[1,32], index: 3, kind: input, shape index: {}]
  %s4 = inlined_call_operand.vmem [shape: f32[1,32], index: 4, kind: input, shape index: {}]
  %s5 = inlined_call_operand.vmem [shape: f32[1,32], index: 5, kind: input, shape index: {}]
  %s6 = inlined_call_operand.vmem [shape: bf16[128,32], index: 6, kind: input, shape index: {}]
  %s7 = inlined_call_operand.vmem [shape: f32[1,128], index: 7, kind: input, shape index: {}]
  %s8 = inlined_call_operand.vmem [shape: bf16[32,128], index: 8, kind: input, shape index: {}]
  %s9 = inlined_call_operand.vmem [shape: f32[1,32], index: 9, kind: input, shape index: {}]
  %s10 = inlined_call_operand.vmem [shape: f32[1,32], index: 10, kind: input, shape index: {}]
  %s11 = inlined_call_operand.vmem [shape: f32[1,32], index: 11, kind: input, shape index: {}]
  %s12 = inlined_call_operand.vmem [shape: f32[16,32], index: 12, kind: output, shape index: {}]
  %s13 = sld [smem:[#allocation0]]
  $region81: #{encoder_forward.8} parent=0
    _
  %s15 = ssub.s32 1, %s13
  %s16 = scalar_select 0, %s15, %s13
  loop: start=0, step=1, limit=4
  $region2: #{encoder_forward.8} parent=0 // loop_pre_header
    _
  $region3: #{encoder_forward.8} parent=0 // loop_header
    %s18 = sphi 0, %s22
    %p19 = scmp.ge.s32.totalorder %s18, 4
    %s28 = sphi 0, %s30
    %s31 = sphi 0, %s28
    %s32 = sphi 0, %s31
    %s48 = sphi 0, %s32
    %s54 = sphi 0, %s56
    %s57 = sphi 0, %s54
    %s58 = sphi 0, %s57
    %s74 = sphi 0, %s58
    %s78 = sphi 0, %s78
    %s80 = sphi 0, %s78
    %s81 = sphi 0, %s80
    %s95 = sphi 0, %s81
    %s99 = sphi 0, %s99
    %s101 = sphi 0, %s99
    %s102 = sphi 0, %s101
    %s116 = sphi 0, %s102
    %s120 = sphi 0, %s120
    %s122 = sphi 0, %s120
    %s123 = sphi 0, %s122
    %s137 = sphi 0, %s123
    %s141 = sphi 0, %s141
    %s143 = sphi 0, %s141
    %s144 = sphi 0, %s143
    %s158 = sphi 0, %s144
    %s162 = sphi 0, %s162
    %s164 = sphi 0, %s162
    %s165 = sphi 0, %s164
    %s179 = sphi 0, %s165
    %s183 = sphi 0, %s183
    %s185 = sphi 0, %s183
    %s186 = sphi 0, %s185
    %s200 = sphi 0, %s186
    %s204 = sphi 0, %s204
    %s206 = sphi 0, %s204
    %s207 = sphi 0, %s206
    %s221 = sphi 0, %s207
    %s225 = sphi 0, %s225
    %s227 = sphi 0, %s225
    %s228 = sphi 0, %s227
    %s242 = sphi 0, %s228
    %s246 = sphi 0, %s246
    %s248 = sphi 0, %s246
    %s249 = sphi 0, %s248
    %s263 = sphi 0, %s249
    %s267 = sphi 0, %s267
    %s269 = sphi 0, %s267
    %s270 = sphi 0, %s269
    %s284 = sphi 0, %s270
    %s290 = sphi 0, %s292
    %s293 = sphi 0, %s290
    %s294 = sphi 0, %s293
    %s310 = sphi 0, %s294
  $region4: #{encoder_forward.8} parent=0 // loop_header_branch
    %21 = sbr.rel (%p19) target = $region8
  $region5: #{encoder_forward.8} parent=0 // loop_body
    %s23 = ssub.s32 %s18, 1
    %s24 = ssub.s32 %s18, 2
    %s25 = sadd.s32 %s18, 1
    %s26 = ssub.s32 %s18, %s25
    %p27 = scmp.eq.s32.totalorder %s26, 0
    %s29 = sadd.s32 %s28, 1
    %s30 = scalar_select %p27, %s28, %s29
    %p33 = pneg %p27
    %p34 = scmp.eq.s32.totalorder %s18, 1
    %p35 = por %p33, %p34
    %p36 = scmp.ne.s32.totalorder %s28, %s31
    %p37 = scmp.eq.s32.totalorder %s18, 0
    %p38 = por %p36, %p37
    %p39 = scmp.ne.s32.totalorder %s28, %s31
    %p40 = scmp.eq.s32.totalorder %s23, 1
    %p41 = por %p39, %p40
    %p42 = scmp.ne.s32.totalorder %s31, %s32
    %p43 = scmp.eq.s32.totalorder %s23, 0
    %p44 = por %p42, %p43
    %p45 = scmp.ne.s32.totalorder %s31, %s32
    %p46 = scmp.eq.s32.totalorder %s24, 1
    %p47 = por %p45, %p46
    %p49 = scmp.ne.s32.totalorder %s32, %s48
    %p50 = scmp.eq.s32.totalorder %s24, 0
    %p51 = por %p49, %p50
    %s52 = ssub.s32 %s18, %s25
    %p53 = scmp.eq.s32.totalorder %s52, 0
    %s55 = sadd.s32 %s54, 1
    %s56 = scalar_select %p53, %s54, %s55
    %p59 = pneg %p53
    %p60 = scmp.eq.s32.totalorder %s18, 1
    %p61 = por %p59, %p60
    %p62 = scmp.ne.s32.totalorder %s54, %s57
    %p63 = scmp.eq.s32.totalorder %s18, 0
    %p64 = por %p62, %p63
    %p65 = scmp.ne.s32.totalorder %s54, %s57
    %p66 = scmp.eq.s32.totalorder %s23, 1
    %p67 = por %p65, %p66
    %p68 = scmp.ne.s32.totalorder %s57, %s58
    %p69 = scmp.eq.s32.totalorder %s23, 0
    %p70 = por %p68, %p69
    %p71 = scmp.ne.s32.totalorder %s57, %s58
    %p72 = scmp.eq.s32.totalorder %s24, 1
    %p73 = por %p71, %p72
    %p75 = scmp.ne.s32.totalorder %s58, %s74
    %p76 = scmp.eq.s32.totalorder %s24, 0
    %p77 = por %p75, %p76
    %s79 = sadd.s32 %s78, 1
    %p82 = scmp.eq.s32.totalorder %s18, 1
    %p83 = scmp.ne.s32.totalorder %s78, %s80
    %p84 = scmp.eq.s32.totalorder %s18, 0
    %p85 = por %p83, %p84
    %p86 = scmp.ne.s32.totalorder %s78, %s80
    %p87 = scmp.eq.s32.totalorder %s23, 1
    %p88 = por %p86, %p87
    %p89 = scmp.ne.s32.totalorder %s80, %s81
    %p90 = scmp.eq.s32.totalorder %s23, 0
    %p91 = por %p89, %p90
    %p92 = scmp.ne.s32.totalorder %s80, %s81
    %p93 = scmp.eq.s32.totalorder %s24, 1
    %p94 = por %p92, %p93
    %p96 = scmp.ne.s32.totalorder %s81, %s95
    %p97 = scmp.eq.s32.totalorder %s24, 0
    %p98 = por %p96, %p97
    %s100 = sadd.s32 %s99, 1
    %p103 = scmp.eq.s32.totalorder %s18, 1
    %p104 = scmp.ne.s32.totalorder %s99, %s101
    %p105 = scmp.eq.s32.totalorder %s18, 0
    %p106 = por %p104, %p105
    %p107 = scmp.ne.s32.totalorder %s99, %s101
    %p108 = scmp.eq.s32.totalorder %s23, 1
    %p109 = por %p107, %p108
    %p110 = scmp.ne.s32.totalorder %s101, %s102
    %p111 = scmp.eq.s32.totalorder %s23, 0
    %p112 = por %p110, %p111
    %p113 = scmp.ne.s32.totalorder %s101, %s102
    %p114 = scmp.eq.s32.totalorder %s24, 1
    %p115 = por %p113, %p114
    %p117 = scmp.ne.s32.totalorder %s102, %s116
    %p118 = scmp.eq.s32.totalorder %s24, 0
    %p119 = por %p117, %p118
    %s121 = sadd.s32 %s120, 1
    %p124 = scmp.eq.s32.totalorder %s18, 1
    %p125 = scmp.ne.s32.totalorder %s120, %s122
    %p126 = scmp.eq.s32.totalorder %s18, 0
    %p127 = por %p125, %p126
    %p128 = scmp.ne.s32.totalorder %s120, %s122
    %p129 = scmp.eq.s32.totalorder %s23, 1
    %p130 = por %p128, %p129
    %p131 = scmp.ne.s32.totalorder %s122, %s123
    %p132 = scmp.eq.s32.totalorder %s23, 0
    %p133 = por %p131, %p132
    %p134 = scmp.ne.s32.totalorder %s122, %s123
    %p135 = scmp.eq.s32.totalorder %s24, 1
    %p136 = por %p134, %p135
    %p138 = scmp.ne.s32.totalorder %s123, %s137
    %p139 = scmp.eq.s32.totalorder %s24, 0
    %p140 = por %p138, %p139
    %s142 = sadd.s32 %s141, 1
    %p145 = scmp.eq.s32.totalorder %s18, 1
    %p146 = scmp.ne.s32.totalorder %s141, %s143
    %p147 = scmp.eq.s32.totalorder %s18, 0
    %p148 = por %p146, %p147
    %p149 = scmp.ne.s32.totalorder %s141, %s143
    %p150 = scmp.eq.s32.totalorder %s23, 1
    %p151 = por %p149, %p150
    %p152 = scmp.ne.s32.totalorder %s143, %s144
    %p153 = scmp.eq.s32.totalorder %s23, 0
    %p154 = por %p152, %p153
    %p155 = scmp.ne.s32.totalorder %s143, %s144
    %p156 = scmp.eq.s32.totalorder %s24, 1
    %p157 = por %p155, %p156
    %p159 = scmp.ne.s32.totalorder %s144, %s158
    %p160 = scmp.eq.s32.totalorder %s24, 0
    %p161 = por %p159, %p160
    %s163 = sadd.s32 %s162, 1
    %p166 = scmp.eq.s32.totalorder %s18, 1
    %p167 = scmp.ne.s32.totalorder %s162, %s164
    %p168 = scmp.eq.s32.totalorder %s18, 0
    %p169 = por %p167, %p168
    %p170 = scmp.ne.s32.totalorder %s162, %s164
    %p171 = scmp.eq.s32.totalorder %s23, 1
    %p172 = por %p170, %p171
    %p173 = scmp.ne.s32.totalorder %s164, %s165
    %p174 = scmp.eq.s32.totalorder %s23, 0
    %p175 = por %p173, %p174
    %p176 = scmp.ne.s32.totalorder %s164, %s165
    %p177 = scmp.eq.s32.totalorder %s24, 1
    %p178 = por %p176, %p177
    %p180 = scmp.ne.s32.totalorder %s165, %s179
    %p181 = scmp.eq.s32.totalorder %s24, 0
    %p182 = por %p180, %p181
    %s184 = sadd.s32 %s183, 1
    %p187 = scmp.eq.s32.totalorder %s18, 1
    %p188 = scmp.ne.s32.totalorder %s183, %s185
    %p189 = scmp.eq.s32.totalorder %s18, 0
    %p190 = por %p188, %p189
    %p191 = scmp.ne.s32.totalorder %s183, %s185
    %p192 = scmp.eq.s32.totalorder %s23, 1
    %p193 = por %p191, %p192
    %p194 = scmp.ne.s32.totalorder %s185, %s186
    %p195 = scmp.eq.s32.totalorder %s23, 0
    %p196 = por %p194, %p195
    %p197 = scmp.ne.s32.totalorder %s185, %s186
    %p198 = scmp.eq.s32.totalorder %s24, 1
    %p199 = por %p197, %p198
    %p201 = scmp.ne.s32.totalorder %s186, %s200
    %p202 = scmp.eq.s32.totalorder %s24, 0
    %p203 = por %p201, %p202
    %s205 = sadd.s32 %s204, 1
    %p208 = scmp.eq.s32.totalorder %s18, 1
    %p209 = scmp.ne.s32.totalorder %s204, %s206
    %p210 = scmp.eq.s32.totalorder %s18, 0
    %p211 = por %p209, %p210
    %p212 = scmp.ne.s32.totalorder %s204, %s206
    %p213 = scmp.eq.s32.totalorder %s23, 1
    %p214 = por %p212, %p213
    %p215 = scmp.ne.s32.totalorder %s206, %s207
    %p216 = scmp.eq.s32.totalorder %s23, 0
    %p217 = por %p215, %p216
    %p218 = scmp.ne.s32.totalorder %s206, %s207
    %p219 = scmp.eq.s32.totalorder %s24, 1
    %p220 = por %p218, %p219
    %p222 = scmp.ne.s32.totalorder %s207, %s221
    %p223 = scmp.eq.s32.totalorder %s24, 0
    %p224 = por %p222, %p223
    %s226 = sadd.s32 %s225, 1
    %p229 = scmp.eq.s32.totalorder %s18, 1
    %p230 = scmp.ne.s32.totalorder %s225, %s227
    %p231 = scmp.eq.s32.totalorder %s18, 0
    %p232 = por %p230, %p231
    %p233 = scmp.ne.s32.totalorder %s225, %s227
    %p234 = scmp.eq.s32.totalorder %s23, 1
    %p235 = por %p233, %p234
    %p236 = scmp.ne.s32.totalorder %s227, %s228
    %p237 = scmp.eq.s32.totalorder %s23, 0
    %p238 = por %p236, %p237
    %p239 = scmp.ne.s32.totalorder %s227, %s228
    %p240 = scmp.eq.s32.totalorder %s24, 1
    %p241 = por %p239, %p240
    %p243 = scmp.ne.s32.totalorder %s228, %s242
    %p244 = scmp.eq.s32.totalorder %s24, 0
    %p245 = por %p243, %p244
    %s247 = sadd.s32 %s246, 1
    %p250 = scmp.eq.s32.totalorder %s18, 1
    %p251 = scmp.ne.s32.totalorder %s246, %s248
    %p252 = scmp.eq.s32.totalorder %s18, 0
    %p253 = por %p251, %p252
    %p254 = scmp.ne.s32.totalorder %s246, %s248
    %p255 = scmp.eq.s32.totalorder %s23, 1
    %p256 = por %p254, %p255
    %p257 = scmp.ne.s32.totalorder %s248, %s249
    %p258 = scmp.eq.s32.totalorder %s23, 0
    %p259 = por %p257, %p258
    %p260 = scmp.ne.s32.totalorder %s248, %s249
    %p261 = scmp.eq.s32.totalorder %s24, 1
    %p262 = por %p260, %p261
    %p264 = scmp.ne.s32.totalorder %s249, %s263
    %p265 = scmp.eq.s32.totalorder %s24, 0
    %p266 = por %p264, %p265
    %s268 = sadd.s32 %s267, 1
    %p271 = scmp.eq.s32.totalorder %s18, 1
    %p272 = scmp.ne.s32.totalorder %s267, %s269
    %p273 = scmp.eq.s32.totalorder %s18, 0
    %p274 = por %p272, %p273
    %p275 = scmp.ne.s32.totalorder %s267, %s269
    %p276 = scmp.eq.s32.totalorder %s23, 1
    %p277 = por %p275, %p276
    %p278 = scmp.ne.s32.totalorder %s269, %s270
    %p279 = scmp.eq.s32.totalorder %s23, 0
    %p280 = por %p278, %p279
    %p281 = scmp.ne.s32.totalorder %s269, %s270
    %p282 = scmp.eq.s32.totalorder %s24, 1
    %p283 = por %p281, %p282
    %p285 = scmp.ne.s32.totalorder %s270, %s284
    %p286 = scmp.eq.s32.totalorder %s24, 0
    %p287 = por %p285, %p286
    %s288 = ssub.s32 %s18, %s25
    %p289 = scmp.eq.s32.totalorder %s288, 0
    %s291 = sadd.s32 %s290, 1
    %s292 = scalar_select %p289, %s290, %s291
    %p295 = pneg %p289
    %p296 = scmp.eq.s32.totalorder %s18, 1
    %p297 = por %p295, %p296
    %p298 = scmp.ne.s32.totalorder %s290, %s293
    %p299 = scmp.eq.s32.totalorder %s18, 0
    %p300 = por %p298, %p299
    %p301 = scmp.ne.s32.totalorder %s290, %s293
    %p302 = scmp.eq.s32.totalorder %s23, 1
    %p303 = por %p301, %p302
    %p304 = scmp.ne.s32.totalorder %s293, %s294
    %p305 = scmp.eq.s32.totalorder %s23, 0
    %p306 = por %p304, %p305
    %p307 = scmp.ne.s32.totalorder %s293, %s294
    %p308 = scmp.eq.s32.totalorder %s24, 1
    %p309 = por %p307, %p308
    %p311 = scmp.ne.s32.totalorder %s294, %s310
    %p312 = scmp.eq.s32.totalorder %s24, 0
    %p313 = por %p311, %p312
    %p314 = scmp.le.s32.totalorder 1, %s18
    %p315 = scmp.lt.s32.totalorder %s18, 3
    %p316 = pnand %p314, %p315
    %p317 = pneg %p316
    // Predicated region
    $region9: #{encoder_forward.8} parent=5 // pred_check
      _
    $region10: #{encoder_forward.8} parent=5 // pred_check_branch
      %319 = sbr.rel (%p316) target = $region12
    $region11: #{encoder_forward.8} parent=5 // pred_region
      %s320 = ssub.s32 %s18, 1
      // Predicated region
      $region13: #{encoder_forward.8} parent=11 // pred_check
        %p321 = pneg %p91
      $region14: #{encoder_forward.8} parent=11 // pred_check_branch
        %323 = sbr.rel (%p321) target = $region16
      $region15: #{encoder_forward.8} parent=11 // pred_region
        _
      $region16: #{encoder_forward.8} parent=11 // pred_fallthru
        _
      // Predicated region
      $region17: #{encoder_forward.8} parent=11 // pred_check
        %p324 = pneg %p112
      $region18: #{encoder_forward.8} parent=11 // pred_check_branch
        %326 = sbr.rel (%p324) target = $region20
      $region19: #{encoder_forward.8} parent=11 // pred_region
        _
      $region20: #{encoder_forward.8} parent=11 // pred_fallthru
        _
      // Predicated region
      $region21: #{encoder_forward.8} parent=11 // pred_check
        %p327 = pneg %p133
      $region22: #{encoder_forward.8} parent=11 // pred_check_branch
        %329 = sbr.rel (%p327) target = $region24
      $region23: #{encoder_forward.8} parent=11 // pred_region
        _
      $region24: #{encoder_forward.8} parent=11 // pred_fallthru
        _
      // Predicated region
      $region25: #{encoder_forward.8} parent=11 // pred_check
        %p330 = pneg %p154
      $region26: #{encoder_forward.8} parent=11 // pred_check_branch
        %332 = sbr.rel (%p330) target = $region28
      $region27: #{encoder_forward.8} parent=11 // pred_region
        _
      $region28: #{encoder_forward.8} parent=11 // pred_fallthru
        _
      // Predicated region
      $region29: #{encoder_forward.8} parent=11 // pred_check
        %p333 = pneg %p175
      $region30: #{encoder_forward.8} parent=11 // pred_check_branch
        %335 = sbr.rel (%p333) target = $region32
      $region31: #{encoder_forward.8} parent=11 // pred_region
        _
      $region32: #{encoder_forward.8} parent=11 // pred_fallthru
        _
      // Predicated region
      $region33: #{encoder_forward.8} parent=11 // pred_check
        %p336 = pneg %p196
      $region34: #{encoder_forward.8} parent=11 // pred_check_branch
        %338 = sbr.rel (%p336) target = $region36
      $region35: #{encoder_forward.8} parent=11 // pred_region
        _
      $region36: #{encoder_forward.8} parent=11 // pred_fallthru
        _
      // Predicated region
      $region37: #{encoder_forward.8} parent=11 // pred_check
        %p339 = pneg %p217
      $region38: #{encoder_forward.8} parent=11 // pred_check_branch
        %341 = sbr.rel (%p339) target = $region40
      $region39: #{encoder_forward.8} parent=11 // pred_region
        _
      $region40: #{encoder_forward.8} parent=11 // pred_fallthru
        _
      // Predicated region
      $region41: #{encoder_forward.8} parent=11 // pred_check
        %p342 = pneg %p238
      $region42: #{encoder_forward.8} parent=11 // pred_check_branch
        %344 = sbr.rel (%p342) target = $region44
      $region43: #{encoder_forward.8} parent=11 // pred_region
        _
      $region44: #{encoder_forward.8} parent=11 // pred_fallthru
        _
      // Predicated region
      $region45: #{encoder_forward.8} parent=11 // pred_check
        %p345 = pneg %p259
      $region46: #{encoder_forward.8} parent=11 // pred_check_branch
        %347 = sbr.rel (%p345) target = $region48
      $region47: #{encoder_forward.8} parent=11 // pred_region
        _
      $region48: #{encoder_forward.8} parent=11 // pred_fallthru
        _
      // Predicated region
      $region49: #{encoder_forward.8} parent=11 // pred_check
        %p348 = pneg %p280
      $region50: #{encoder_forward.8} parent=11 // pred_check_branch
        %350 = sbr.rel (%p348) target = $region52
      $region51: #{encoder_forward.8} parent=11 // pred_region
        _
      $region52: #{encoder_forward.8} parent=11 // pred_fallthru
        _
    $region12: #{encoder_forward.8} parent=5 // pred_fallthru
      _
    %p351 = scmp.lt.s32.totalorder %s18, 2
    // Predicated region
    $region53: #{encoder_forward.8} parent=5 // pred_check
      %p352 = pneg %p351
    $region54: #{encoder_forward.8} parent=5 // pred_check_branch
      %354 = sbr.rel (%p352) target = $region56
    $region55: #{encoder_forward.8} parent=5 // pred_region
      // Predicated region
      $region57: #{encoder_forward.8} parent=55 // pred_check
        %p355 = pneg %p38
      $region58: #{encoder_forward.8} parent=55 // pred_check_branch
        %357 = sbr.rel (%p355) target = $region60
      $region59: #{encoder_forward.8} parent=55 // pred_region
        %p358 = scmp.lt.s32.totalorder %s18, 1
        %s359 = scalar_select %p358, %s18, 1
        %s360 = smul.addr %s359, 8
        %s361 = scalar_lea.vmem %s0, %s360
      $region60: #{encoder_forward.8} parent=55 // pred_fallthru
        _
      // Predicated region
      $region61: #{encoder_forward.8} parent=55 // pred_check
        %p362 = pneg %p64
      $region62: #{encoder_forward.8} parent=55 // pred_check_branch
        %364 = sbr.rel (%p362) target = $region64
      $region63: #{encoder_forward.8} parent=55 // pred_region
        %p365 = scmp.lt.s32.totalorder %s18, 1
        %s366 = scalar_select %p365, %s18, 1
        %s367 = smul.addr %s366, 8
        %s368 = scalar_lea.vmem %s1, %s367
      $region64: #{encoder_forward.8} parent=55 // pred_fallthru
        _
    $region56: #{encoder_forward.8} parent=5 // pred_fallthru
      _
    %p369 = scmp.le.s32.totalorder 1, %s18
    %p370 = scmp.lt.s32.totalorder %s18, 3
    %p371 = pnand %p369, %p370
    %p372 = pneg %p371
    // Predicated region
    $region65: #{encoder_forward.8} parent=5 // pred_check
      _
    $region66: #{encoder_forward.8} parent=5 // pred_check_branch
      %374 = sbr.rel (%p371) target = $region68
    $region67: #{encoder_forward.8} parent=5 // pred_region
      %s375 = ssub.s32 %s18, 1
      %p376 = scmp.lt.s32.totalorder %s23, 1
      %s377 = scalar_select %p376, %s23, 1
      %s378 = smul.addr %s377, 8
      %s379 = scalar_lea.vmem %s0, %s378
      %p380 = pneg %p44
      %p381 = pneg %p41
      %p382 = scmp.lt.s32.totalorder %s23, 1
      %s383 = scalar_select %p382, %s23, 1
      %s384 = smul.addr %s383, 8
      %s385 = scalar_lea.vmem %s1, %s384
      %p386 = pneg %p70
      %p387 = pneg %p67
      %p388 = pneg %p91
      %p389 = pneg %p88
      %p390 = pneg %p112
      %p391 = pneg %p109
      %p392 = pneg %p133
      %p393 = pneg %p130
      %p394 = pneg %p154
      %p395 = pneg %p151
      %p396 = pneg %p175
      %p397 = pneg %p172
      %p398 = pneg %p196
      %p399 = pneg %p193
      %p400 = pneg %p217
      %p401 = pneg %p214
      %p402 = pneg %p238
      %p403 = pneg %p235
      %p404 = pneg %p259
      %p405 = pneg %p256
      %p406 = pneg %p280
      %p407 = pneg %p277
      %p408 = pneg %p306
      %p409 = pneg %p303
      %p410 = scmp.lt.s32.totalorder %s23, 1
      %s411 = scalar_select %p410, %s23, 1
      %s412 = smul.addr %s411, 8
      %s413 = scalar_lea.vmem %s12, %s412
      %p414 = scmp.lt.s32.totalorder %s23, 1
      %s415 = scalar_select %p414, %s23, 1
      %s416 = smul.addr %s415, 8
      %s417 = scalar_lea.vmem %s0, %s416
      %p418 = scmp.lt.s32.totalorder %s23, 1
      %s419 = scalar_select %p418, %s23, 1
      %s420 = smul.addr %s419, 8
      %s421 = scalar_lea.vmem %s1, %s420
      %p422 = scmp.lt.s32.totalorder %s23, 1
      %s423 = scalar_select %p422, %s23, 1
      %s424 = smul.addr %s423, 8
      %s425 = scalar_lea.vmem %s12, %s424
      %v427 = vld [vmem:[%s417] sm:$0xff]
      %v428 = vld [vmem:[%s421] sm:$0xff]
      %v429 = vpack.c.bf16 %v427, %v427
      %v430 = vld [vmem:[%s2] sm:$0xf]
      %v431 = vld [vmem:[%s2 + $0x4] sm:$0xf]
      %v432 = vld [vmem:[%s2 + $0x8] sm:$0xf]
      %v433 = vld [vmem:[%s2 + $0xc] sm:$0xf]
      %v434 = vld [vmem:[%s3] sm:$0x1]
      %v436 = vperm.slane %v434, 0
      %v442 = vunpack.c.l.b16 %v430
      %v443 = vunpack.c.l.b16 %v431
      %v444 = vunpack.c.l.b16 %v432
      %v445 = vunpack.c.l.b16 %v433
      %v446 = vpack.c.b16 %v443, %v442
      %v447 = vpack.c.b16 %v445, %v444
      %vm448 = vcmask 261120
      %v450 = vsel %vm448, %v429, 0
      %v453 = vsel %vm448, %v446, 0
      %v456 = vsel %vm448, %v447, 0
      %458 = vmatpush.bf16.xpose.msra.mxu0 0
      %459 = vmatpush.bf16.xpose.msra.mxu0 0
      %460 = vmatpush.bf16.xpose.msra.mxu0 0
      %461 = vmatpush.bf16.xpose.msra.mxu0 0
      %462 = vmatpush.bf16.xpose.msra.mxu0 0
      %463 = vmatpush.bf16.xpose.msra.mxu0 0
      %464 = vmatpush.bf16.xpose.msra.mxu0 %v456
      %465 = vmatpush.bf16.xpose.msra.mxu0 %v453
      %466 = vmatmul.bf16.gmra.mxu0 %v450
      %v467 = vpop.f32.mrf.mxu0
      %v468 = vadd.f32 %v436, %v467
      %v469 = vpop.f32.mrf.mxu0
      %470 = vdwg.mxu0
      %v471 = vadd.f32 %v468, %v428
      %v472 = vld [vmem:[%s4] sm:$0x1]
      %v473 = vld [vmem:[%s5] sm:$0x1]
      %v474 = vsel %vm448, %v471, 0.0
      %475 = vadd.xlane.f32.xlu0 %v474
      %v476 = vpop.xlane.xlu0 %475
      %v477 = vrcp.pop 32.0
      %v478 = vmul.f32 32.0, %v477
      %v479 = vsub.f32 1.0, %v478
      %v480 = vmul.f32 %v477, %v479
      %v481 = vadd.f32 %v477, %v480
      %vm482 = vweird.f32 %v477
      %v483 = vsel %vm482, %v477, %v481
      %v484 = vmul.f32 %v476, %v483
      %v485 = vsub.f32 %v471, %v484
      %v486 = vmul.f32 %v485, %v485
      %v487 = vsel %vm448, %v486, 0.0
      %488 = vadd.xlane.f32.xlu0 %v487
      %v489 = vpop.xlane.xlu0 %488
      %v490 = vmul.f32 %v489, %v483
      %v491 = vadd.f32 %v490, 1e-05
      %v492 = vrsqrt.pop %v491
      %v493 = vmul.f32 %v492, %v491
      %v494 = vmul.f32 %v493, %v492
      %v495 = vmul.f32 0.5, %v494
      %v496 = vsub.f32 1.5, %v495
      %v497 = vmul.f32 %v492, %v496
      %vm498 = vweird.f32 %v491
      %vm499 = vweird.f32 %v492
      %vm500 = vmor %vm498, %vm499
      %v501 = vsel %vm500, %v492, %v497
      %v502 = vmul.f32 %v485, %v501
      %v504 = vperm.slane %v472, 0
      %v506 = vmul.f32 %v502, %v504
      %v508 = vperm.slane %v473, 0
      %v510 = vadd.f32 %v506, %v508
      %v511 = vpack.c.bf16 %v510, %v510
      %v512 = vld [vmem:[%s6] sm:$0xf]
      %v513 = vld [vmem:[%s6 + $0x4] sm:$0xf]
      %v514 = vld [vmem:[%s6 + $0x8] sm:$0xf]
      %v515 = vld [vmem:[%s6 + $0xc] sm:$0xf]
      %v516 = vld [vmem:[%s6 + $0x10] sm:$0xf]
      %v517 = vld [vmem:[%s6 + $0x14] sm:$0xf]
      %v518 = vld [vmem:[%s6 + $0x18] sm:$0xf]
      %v519 = vld [vmem:[%s6 + $0x1c] sm:$0xf]
      %v520 = vld [vmem:[%s6 + $0x20] sm:$0xf]
      %v521 = vld [vmem:[%s6 + $0x24] sm:$0xf]
      %v522 = vld [vmem:[%s6 + $0x28] sm:$0xf]
      %v523 = vld [vmem:[%s6 + $0x2c] sm:$0xf]
      %v524 = vld [vmem:[%s6 + $0x30] sm:$0xf]
      %v525 = vld [vmem:[%s6 + $0x34] sm:$0xf]
      %v526 = vld [vmem:[%s6 + $0x38] sm:$0xf]
      %v527 = vld [vmem:[%s6 + $0x3c] sm:$0xf]
      %v528 = vld [vmem:[%s7] sm:$0x1]
      %v530 = vperm.slane %v528, 0
      %v548 = vunpack.c.l.b16 %v512
      %v549 = vunpack.c.l.b16 %v513
      %v550 = vunpack.c.l.b16 %v514
      %v551 = vunpack.c.l.b16 %v515
      %v552 = vunpack.c.l.b16 %v516
      %v553 = vunpack.c.l.b16 %v517
      %v554 = vunpack.c.l.b16 %v518
      %v555 = vunpack.c.l.b16 %v519
      %v556 = vunpack.c.l.b16 %v520
      %v557 = vunpack.c.l.b16 %v521
      %v558 = vunpack.c.l.b16 %v522
      %v559 = vunpack.c.l.b16 %v523
      %v560 = vunpack.c.l.b16 %v524
      %v561 = vunpack.c.l.b16 %v525
      %v562 = vunpack.c.l.b16 %v526
      %v563 = vunpack.c.l.b16 %v527
      %v564 = vpack.c.b16 %v549, %v548
      %v565 = vpack.c.b16 %v551, %v550
      %v566 = vpack.c.b16 %v553, %v552
      %v567 = vpack.c.b16 %v555, %v554
      %v568 = vpack.c.b16 %v557, %v556
      %v569 = vpack.c.b16 %v559, %v558
      %v570 = vpack.c.b16 %v561, %v560
      %v571 = vpack.c.b16 %v563, %v562
      %v573 = vsel %vm448, %v511, 0
      %v576 = vsel %vm448, %v564, 0
      %v579 = vsel %vm448, %v565, 0
      %v582 = vsel %vm448, %v566, 0
      %v585 = vsel %vm448, %v567, 0
      %v588 = vsel %vm448, %v568, 0
      %v591 = vsel %vm448, %v569, 0
      %v594 = vsel %vm448, %v570, 0
      %v597 = vsel %vm448, %v571, 0
      %599 = vmatpush.bf16.xpose.msra.mxu0 %v597
      %600 = vmatpush.bf16.xpose.msra.mxu0 %v594
      %601 = vmatpush.bf16.xpose.msra.mxu0 %v591
      %602 = vmatpush.bf16.xpose.msra.mxu0 %v588
      %603 = vmatpush.bf16.xpose.msra.mxu0 %v585
      %604 = vmatpush.bf16.xpose.msra.mxu0 %v582
      %605 = vmatpush.bf16.xpose.msra.mxu0 %v579
      %606 = vmatpush.bf16.xpose.msra.mxu0 %v576
      %607 = vmatmul.bf16.gmra.mxu0 %v573
      %v608 = vpop.f32.mrf.mxu0
      %v609 = vadd.f32 %v530, %v608
      %v610 = vpop.f32.mrf.mxu0
      %611 = vdwg.mxu0
      %v612 = vmax.f32 %v609, 0.0
      %v613 = vpack.c.bf16 %v612, %v612
      %v614 = vld [vmem:[%s8] sm:$0xf]
      %v615 = vld [vmem:[%s8 + $0x4] sm:$0xf]
      %v616 = vld [vmem:[%s8 + $0x8] sm:$0xf]
      %v617 = vld [vmem:[%s8 + $0xc] sm:$0xf]
      %v618 = vld [vmem:[%s9] sm:$0x1]
      %v620 = vperm.slane %v618, 0
      %v626 = vunpack.c.l.b16 %v614
      %v627 = vunpack.c.l.b16 %v615
      %v628 = vunpack.c.l.b16 %v616
      %v629 = vunpack.c.l.b16 %v617
      %v630 = vpack.c.b16 %v627, %v626
      %v631 = vpack.c.b16 %v629, %v628
      %634 = vmatpush.bf16.xpose.msra.mxu0 0
      %635 = vmatpush.bf16.xpose.msra.mxu0 0
      %636 = vmatpush.bf16.xpose.msra.mxu0 0
      %637 = vmatpush.bf16.xpose.msra.mxu0 0
      %638 = vmatpush.bf16.xpose.msra.mxu0 0
      %639 = vmatpush.bf16.xpose.msra.mxu0 0
      %640 = vmatpush.bf16.xpose.msra.mxu0 %v631
      %641 = vmatpush.bf16.xpose.msra.mxu0 %v630
      %642 = vmatmul.bf16.gmra.mxu0 %v613
      %v643 = vpop.f32.mrf.mxu0
      %v644 = vadd.f32 %v620, %v643
      %v645 = vpop.f32.mrf.mxu0
      %646 = vdwg.mxu0
      %v647 = vadd.f32 %v644, %v510
      %v648 = vld [vmem:[%s10] sm:$0x1]
      %v649 = vld [vmem:[%s11] sm:$0x1]
      %v650 = vsel %vm448, %v647, 0.0
      %651 = vadd.xlane.f32.xlu0 %v650
      %v652 = vpop.xlane.xlu0 %651
      %v653 = vmul.f32 %v652, %v483
      %v654 = vsub.f32 %v647, %v653
      %v655 = vmul.f32 %v654, %v654
      %v656 = vsel %vm448, %v655, 0.0
      %657 = vadd.xlane.f32.xlu0 %v656
      %v658 = vpop.xlane.xlu0 %657
      %v659 = vmul.f32 %v658, %v483
      %v660 = vadd.f32 %v659, 1e-05
      %v661 = vrsqrt.pop %v660
      %v662 = vmul.f32 %v661, %v660
      %v663 = vmul.f32 %v662, %v661
      %v664 = vmul.f32 0.5, %v663
      %v665 = vsub.f32 1.5, %v664
      %v666 = vmul.f32 %v661, %v665
      %vm667 = vweird.f32 %v660
      %vm668 = vweird.f32 %v661
      %vm669 = vmor %vm667, %vm668
      %v670 = vsel %vm669, %v661, %v666
      %v671 = vmul.f32 %v654, %v670
      %v673 = vperm.slane %v648, 0
      %v675 = vmul.f32 %v671, %v673
      %v677 = vperm.slane %v649, 0
      %v679 = vadd.f32 %v675, %v677
      %680 = vst.msk [vmem:[%s425] sm:$0xff] %vm448, %v679
      %p681 = scmp.lt.s32.totalorder %s23, 1
      %s682 = scalar_select %p681, %s23, 1
      %s683 = smul.addr %s682, 8
      %s684 = scalar_lea.vmem %s12, %s683
      // Predicated region
      $region69: #{encoder_forward.8} parent=67 // pred_check
        %p685 = pneg %p303
      $region70: #{encoder_forward.8} parent=67 // pred_check_branch
        %687 = sbr.rel (%p685) target = $region72
      $region71: #{encoder_forward.8} parent=67 // pred_region
        _
      $region72: #{encoder_forward.8} parent=67 // pred_fallthru
        _
    $region68: #{encoder_forward.8} parent=5 // pred_fallthru
      _
    %p688 = scmp.le.s32.totalorder 2, %s18
    // Predicated region
    $region73: #{encoder_forward.8} parent=5 // pred_check
      %p689 = pneg %p688
    $region74: #{encoder_forward.8} parent=5 // pred_check_branch
      %691 = sbr.rel (%p689) target = $region76
    $region75: #{encoder_forward.8} parent=5 // pred_region
      %s692 = ssub.s32 %s18, 2
      // Predicated region
      $region77: #{encoder_forward.8} parent=75 // pred_check
        %p693 = pneg %p309
      $region78: #{encoder_forward.8} parent=75 // pred_check_branch
        %695 = sbr.rel (%p693) target = $region80
      $region79: #{encoder_forward.8} parent=75 // pred_region
        %p696 = scmp.lt.s32.totalorder %s24, 1
        %s697 = scalar_select %p696, %s24, 1
        %s698 = smul.addr %s697, 8
        %s699 = scalar_lea.vmem %s12, %s698
      $region80: #{encoder_forward.8} parent=75 // pred_fallthru
        _
    $region76: #{encoder_forward.8} parent=5 // pred_fallthru
      _
  $region6: #{encoder_forward.8} parent=0 // loop_footer
    %s22 = sadd.s32 1, %s18
  $region7: #{encoder_forward.8} parent=0 // loop_footer_branch
    %17 = sbr.rel target = $region3
  $region8: #{encoder_forward.8} parent=0 // loop_exit
    _

// kernel: encoder_forward.11
$region0: #{encoder_forward.11}
  #allocation0 [shape = 'u32[]', space=smem, size = 0x4, offset = 0x4, fixed_abs, tag = 'smem constant byte address 0x4 - core index']
  #allocation1 [shape = 'u32[72,128]{1,0:T(1,128)}', space=vmem, size = 0x9000, scoped, tag = 'internal scratch']
  %s0 = inlined_call_operand.vmem [shape: f32[16,32], index: 0, kind: input, shape index: {}]
  %s1 = inlined_call_operand.vmem [shape: f32[16,32], index: 1, kind: input, shape index: {}]
  %s2 = inlined_call_operand.vmem [shape: bf16[32,32], index: 2, kind: input, shape index: {}]
  %s3 = inlined_call_operand.vmem [shape: f32[1,32], index: 3, kind: input, shape index: {}]
  %s4 = inlined_call_operand.vmem [shape: f32[1,32], index: 4, kind: input, shape index: {}]
  %s5 = inlined_call_operand.vmem [shape: f32[1,32], index: 5, kind: input, shape index: {}]
  %s6 = inlined_call_operand.vmem [shape: bf16[128,32], index: 6, kind: input, shape index: {}]
  %s7 = inlined_call_operand.vmem [shape: f32[1,128], index: 7, kind: input, shape index: {}]
  %s8 = inlined_call_operand.vmem [shape: bf16[32,128], index: 8, kind: input, shape index: {}]
  %s9 = inlined_call_operand.vmem [shape: f32[1,32], index: 9, kind: input, shape index: {}]
  %s10 = inlined_call_operand.vmem [shape: f32[1,32], index: 10, kind: input, shape index: {}]
  %s11 = inlined_call_operand.vmem [shape: f32[1,32], index: 11, kind: input, shape index: {}]
  %s12 = inlined_call_operand.hbm [shape: f32[16,32], index: 12, kind: output, shape index: {}]
  %s13 = sld [smem:[#allocation0]]
  $region81: #{encoder_forward.11} parent=0
    _
  %s15 = ssub.s32 1, %s13
  %s16 = scalar_select 0, %s15, %s13
  $region1: #{encoder_forward.11} parent=0
    #allocation2 [shape = 'u8[8192]{0}', space=vmem, size = 0x2000, scoped, tag = 'output window, operand 0']
    #allocation3 [shape = 's32[2]{0}', space=sflag, size = 0x8, scoped, tag = 'scoped memory for encoder_forward.11']
    %17 = vsyncpa [#allocation3], 0
    %s18 = scalar_lea.sflag [#allocation3], 1
    %19 = vsyncpa %s18, 0
    loop: start=0, step=1, limit=4
    $region2: #{encoder_forward.11} parent=1 // loop_pre_header
      _
    $region3: #{encoder_forward.11} parent=1 // loop_header
      %s21 = sphi 0, %s25
      %p22 = scmp.ge.s32.totalorder %s21, 4
      %s31 = sphi 0, %s33
      %s34 = sphi 0, %s31
      %s35 = sphi 0, %s34
      %s51 = sphi 0, %s35
      %s57 = sphi 0, %s59
      %s60 = sphi 0, %s57
      %s61 = sphi 0, %s60
      %s77 = sphi 0, %s61
      %s81 = sphi 0, %s81
      %s83 = sphi 0, %s81
      %s84 = sphi 0, %s83
      %s98 = sphi 0, %s84
      %s102 = sphi 0, %s102
      %s104 = sphi 0, %s102
      %s105 = sphi 0, %s104
      %s119 = sphi 0, %s105
      %s123 = sphi 0, %s123
      %s125 = sphi 0, %s123
      %s126 = sphi 0, %s125
      %s140 = sphi 0, %s126
      %s144 = sphi 0, %s144
      %s146 = sphi 0, %s144
      %s147 = sphi 0, %s146
      %s161 = sphi 0, %s147
      %s165 = sphi 0, %s165
      %s167 = sphi 0, %s165
      %s168 = sphi 0, %s167
      %s182 = sphi 0, %s168
      %s186 = sphi 0, %s186
      %s188 = sphi 0, %s186
      %s189 = sphi 0, %s188
      %s203 = sphi 0, %s189
      %s207 = sphi 0, %s207
      %s209 = sphi 0, %s207
      %s210 = sphi 0, %s209
      %s224 = sphi 0, %s210
      %s228 = sphi 0, %s228
      %s230 = sphi 0, %s228
      %s231 = sphi 0, %s230
      %s245 = sphi 0, %s231
      %s249 = sphi 0, %s249
      %s251 = sphi 0, %s249
      %s252 = sphi 0, %s251
      %s266 = sphi 0, %s252
      %s270 = sphi 0, %s270
      %s272 = sphi 0, %s270
      %s273 = sphi 0, %s272
      %s287 = sphi 0, %s273
      %s293 = sphi 0, %s295
      %s296 = sphi 0, %s293
      %s297 = sphi 0, %s296
      %s313 = sphi 0, %s297
    $region4: #{encoder_forward.11} parent=1 // loop_header_branch
      %24 = sbr.rel (%p22) target = $region8
    $region5: #{encoder_forward.11} parent=1 // loop_body
      %s26 = ssub.s32 %s21, 1
      %s27 = ssub.s32 %s21, 2
      %s28 = sadd.s32 %s21, 1
      %s29 = ssub.s32 %s21, %s28
      %p30 = scmp.eq.s32.totalorder %s29, 0
      %s32 = sadd.s32 %s31, 1
      %s33 = scalar_select %p30, %s31, %s32
      %p36 = pneg %p30
      %p37 = scmp.eq.s32.totalorder %s21, 1
      %p38 = por %p36, %p37
      %p39 = scmp.ne.s32.totalorder %s31, %s34
      %p40 = scmp.eq.s32.totalorder %s21, 0
      %p41 = por %p39, %p40
      %p42 = scmp.ne.s32.totalorder %s31, %s34
      %p43 = scmp.eq.s32.totalorder %s26, 1
      %p44 = por %p42, %p43
      %p45 = scmp.ne.s32.totalorder %s34, %s35
      %p46 = scmp.eq.s32.totalorder %s26, 0
      %p47 = por %p45, %p46
      %p48 = scmp.ne.s32.totalorder %s34, %s35
      %p49 = scmp.eq.s32.totalorder %s27, 1
      %p50 = por %p48, %p49
      %p52 = scmp.ne.s32.totalorder %s35, %s51
      %p53 = scmp.eq.s32.totalorder %s27, 0
      %p54 = por %p52, %p53
      %s55 = ssub.s32 %s21, %s28
      %p56 = scmp.eq.s32.totalorder %s55, 0
      %s58 = sadd.s32 %s57, 1
      %s59 = scalar_select %p56, %s57, %s58
      %p62 = pneg %p56
      %p63 = scmp.eq.s32.totalorder %s21, 1
      %p64 = por %p62, %p63
      %p65 = scmp.ne.s32.totalorder %s57, %s60
      %p66 = scmp.eq.s32.totalorder %s21, 0
      %p67 = por %p65, %p66
      %p68 = scmp.ne.s32.totalorder %s57, %s60
      %p69 = scmp.eq.s32.totalorder %s26, 1
      %p70 = por %p68, %p69
      %p71 = scmp.ne.s32.totalorder %s60, %s61
      %p72 = scmp.eq.s32.totalorder %s26, 0
      %p73 = por %p71, %p72
      %p74 = scmp.ne.s32.totalorder %s60, %s61
      %p75 = scmp.eq.s32.totalorder %s27, 1
      %p76 = por %p74, %p75
      %p78 = scmp.ne.s32.totalorder %s61, %s77
      %p79 = scmp.eq.s32.totalorder %s27, 0
      %p80 = por %p78, %p79
      %s82 = sadd.s32 %s81, 1
      %p85 = scmp.eq.s32.totalorder %s21, 1
      %p86 = scmp.ne.s32.totalorder %s81, %s83
      %p87 = scmp.eq.s32.totalorder %s21, 0
      %p88 = por %p86, %p87
      %p89 = scmp.ne.s32.totalorder %s81, %s83
      %p90 = scmp.eq.s32.totalorder %s26, 1
      %p91 = por %p89, %p90
      %p92 = scmp.ne.s32.totalorder %s83, %s84
      %p93 = scmp.eq.s32.totalorder %s26, 0
      %p94 = por %p92, %p93
      %p95 = scmp.ne.s32.totalorder %s83, %s84
      %p96 = scmp.eq.s32.totalorder %s27, 1
      %p97 = por %p95, %p96
      %p99 = scmp.ne.s32.totalorder %s84, %s98
      %p100 = scmp.eq.s32.totalorder %s27, 0
      %p101 = por %p99, %p100
      %s103 = sadd.s32 %s102, 1
      %p106 = scmp.eq.s32.totalorder %s21, 1
      %p107 = scmp.ne.s32.totalorder %s102, %s104
      %p108 = scmp.eq.s32.totalorder %s21, 0
      %p109 = por %p107, %p108
      %p110 = scmp.ne.s32.totalorder %s102, %s104
      %p111 = scmp.eq.s32.totalorder %s26, 1
      %p112 = por %p110, %p111
      %p113 = scmp.ne.s32.totalorder %s104, %s105
      %p114 = scmp.eq.s32.totalorder %s26, 0
      %p115 = por %p113, %p114
      %p116 = scmp.ne.s32.totalorder %s104, %s105
      %p117 = scmp.eq.s32.totalorder %s27, 1
      %p118 = por %p116, %p117
      %p120 = scmp.ne.s32.totalorder %s105, %s119
      %p121 = scmp.eq.s32.totalorder %s27, 0
      %p122 = por %p120, %p121
      %s124 = sadd.s32 %s123, 1
      %p127 = scmp.eq.s32.totalorder %s21, 1
      %p128 = scmp.ne.s32.totalorder %s123, %s125
      %p129 = scmp.eq.s32.totalorder %s21, 0
      %p130 = por %p128, %p129
      %p131 = scmp.ne.s32.totalorder %s123, %s125
      %p132 = scmp.eq.s32.totalorder %s26, 1
      %p133 = por %p131, %p132
      %p134 = scmp.ne.s32.totalorder %s125, %s126
      %p135 = scmp.eq.s32.totalorder %s26, 0
      %p136 = por %p134, %p135
      %p137 = scmp.ne.s32.totalorder %s125, %s126
      %p138 = scmp.eq.s32.totalorder %s27, 1
      %p139 = por %p137, %p138
      %p141 = scmp.ne.s32.totalorder %s126, %s140
      %p142 = scmp.eq.s32.totalorder %s27, 0
      %p143 = por %p141, %p142
      %s145 = sadd.s32 %s144, 1
      %p148 = scmp.eq.s32.totalorder %s21, 1
      %p149 = scmp.ne.s32.totalorder %s144, %s146
      %p150 = scmp.eq.s32.totalorder %s21, 0
      %p151 = por %p149, %p150
      %p152 = scmp.ne.s32.totalorder %s144, %s146
      %p153 = scmp.eq.s32.totalorder %s26, 1
      %p154 = por %p152, %p153
      %p155 = scmp.ne.s32.totalorder %s146, %s147
      %p156 = scmp.eq.s32.totalorder %s26, 0
      %p157 = por %p155, %p156
      %p158 = scmp.ne.s32.totalorder %s146, %s147
      %p159 = scmp.eq.s32.totalorder %s27, 1
      %p160 = por %p158, %p159
      %p162 = scmp.ne.s32.totalorder %s147, %s161
      %p163 = scmp.eq.s32.totalorder %s27, 0
      %p164 = por %p162, %p163
      %s166 = sadd.s32 %s165, 1
      %p169 = scmp.eq.s32.totalorder %s21, 1
      %p170 = scmp.ne.s32.totalorder %s165, %s167
      %p171 = scmp.eq.s32.totalorder %s21, 0
      %p172 = por %p170, %p171
      %p173 = scmp.ne.s32.totalorder %s165, %s167
      %p174 = scmp.eq.s32.totalorder %s26, 1
      %p175 = por %p173, %p174
      %p176 = scmp.ne.s32.totalorder %s167, %s168
      %p177 = scmp.eq.s32.totalorder %s26, 0
      %p178 = por %p176, %p177
      %p179 = scmp.ne.s32.totalorder %s167, %s168
      %p180 = scmp.eq.s32.totalorder %s27, 1
      %p181 = por %p179, %p180
      %p183 = scmp.ne.s32.totalorder %s168, %s182
      %p184 = scmp.eq.s32.totalorder %s27, 0
      %p185 = por %p183, %p184
      %s187 = sadd.s32 %s186, 1
      %p190 = scmp.eq.s32.totalorder %s21, 1
      %p191 = scmp.ne.s32.totalorder %s186, %s188
      %p192 = scmp.eq.s32.totalorder %s21, 0
      %p193 = por %p191, %p192
      %p194 = scmp.ne.s32.totalorder %s186, %s188
      %p195 = scmp.eq.s32.totalorder %s26, 1
      %p196 = por %p194, %p195
      %p197 = scmp.ne.s32.totalorder %s188, %s189
      %p198 = scmp.eq.s32.totalorder %s26, 0
      %p199 = por %p197, %p198
      %p200 = scmp.ne.s32.totalorder %s188, %s189
      %p201 = scmp.eq.s32.totalorder %s27, 1
      %p202 = por %p200, %p201
      %p204 = scmp.ne.s32.totalorder %s189, %s203
      %p205 = scmp.eq.s32.totalorder %s27, 0
      %p206 = por %p204, %p205
      %s208 = sadd.s32 %s207, 1
      %p211 = scmp.eq.s32.totalorder %s21, 1
      %p212 = scmp.ne.s32.totalorder %s207, %s209
      %p213 = scmp.eq.s32.totalorder %s21, 0
      %p214 = por %p212, %p213
      %p215 = scmp.ne.s32.totalorder %s207, %s209
      %p216 = scmp.eq.s32.totalorder %s26, 1
      %p217 = por %p215, %p216
      %p218 = scmp.ne.s32.totalorder %s209, %s210
      %p219 = scmp.eq.s32.totalorder %s26, 0
      %p220 = por %p218, %p219
      %p221 = scmp.ne.s32.totalorder %s209, %s210
      %p222 = scmp.eq.s32.totalorder %s27, 1
      %p223 = por %p221, %p222
      %p225 = scmp.ne.s32.totalorder %s210, %s224
      %p226 = scmp.eq.s32.totalorder %s27, 0
      %p227 = por %p225, %p226
      %s229 = sadd.s32 %s228, 1
      %p232 = scmp.eq.s32.totalorder %s21, 1
      %p233 = scmp.ne.s32.totalorder %s228, %s230
      %p234 = scmp.eq.s32.totalorder %s21, 0
      %p235 = por %p233, %p234
      %p236 = scmp.ne.s32.totalorder %s228, %s230
      %p237 = scmp.eq.s32.totalorder %s26, 1
      %p238 = por %p236, %p237
      %p239 = scmp.ne.s32.totalorder %s230, %s231
      %p240 = scmp.eq.s32.totalorder %s26, 0
      %p241 = por %p239, %p240
      %p242 = scmp.ne.s32.totalorder %s230, %s231
      %p243 = scmp.eq.s32.totalorder %s27, 1
      %p244 = por %p242, %p243
      %p246 = scmp.ne.s32.totalorder %s231, %s245
      %p247 = scmp.eq.s32.totalorder %s27, 0
      %p248 = por %p246, %p247
      %s250 = sadd.s32 %s249, 1
      %p253 = scmp.eq.s32.totalorder %s21, 1
      %p254 = scmp.ne.s32.totalorder %s249, %s251
      %p255 = scmp.eq.s32.totalorder %s21, 0
      %p256 = por %p254, %p255
      %p257 = scmp.ne.s32.totalorder %s249, %s251
      %p258 = scmp.eq.s32.totalorder %s26, 1
      %p259 = por %p257, %p258
      %p260 = scmp.ne.s32.totalorder %s251, %s252
      %p261 = scmp.eq.s32.totalorder %s26, 0
      %p262 = por %p260, %p261
      %p263 = scmp.ne.s32.totalorder %s251, %s252
      %p264 = scmp.eq.s32.totalorder %s27, 1
      %p265 = por %p263, %p264
      %p267 = scmp.ne.s32.totalorder %s252, %s266
      %p268 = scmp.eq.s32.totalorder %s27, 0
      %p269 = por %p267, %p268
      %s271 = sadd.s32 %s270, 1
      %p274 = scmp.eq.s32.totalorder %s21, 1
      %p275 = scmp.ne.s32.totalorder %s270, %s272
      %p276 = scmp.eq.s32.totalorder %s21, 0
      %p277 = por %p275, %p276
      %p278 = scmp.ne.s32.totalorder %s270, %s272
      %p279 = scmp.eq.s32.totalorder %s26, 1
      %p280 = por %p278, %p279
      %p281 = scmp.ne.s32.totalorder %s272, %s273
      %p282 = scmp.eq.s32.totalorder %s26, 0
      %p283 = por %p281, %p282
      %p284 = scmp.ne.s32.totalorder %s272, %s273
      %p285 = scmp.eq.s32.totalorder %s27, 1
      %p286 = por %p284, %p285
      %p288 = scmp.ne.s32.totalorder %s273, %s287
      %p289 = scmp.eq.s32.totalorder %s27, 0
      %p290 = por %p288, %p289
      %s291 = ssub.s32 %s21, %s28
      %p292 = scmp.eq.s32.totalorder %s291, 0
      %s294 = sadd.s32 %s293, 1
      %s295 = scalar_select %p292, %s293, %s294
      %p298 = pneg %p292
      %p299 = scmp.eq.s32.totalorder %s21, 1
      %p300 = por %p298, %p299
      %p301 = scmp.ne.s32.totalorder %s293, %s296
      %p302 = scmp.eq.s32.totalorder %s21, 0
      %p303 = por %p301, %p302
      %p304 = scmp.ne.s32.totalorder %s293, %s296
      %p305 = scmp.eq.s32.totalorder %s26, 1
      %p306 = por %p304, %p305
      %p307 = scmp.ne.s32.totalorder %s296, %s297
      %p308 = scmp.eq.s32.totalorder %s26, 0
      %p309 = por %p307, %p308
      %p310 = scmp.ne.s32.totalorder %s296, %s297
      %p311 = scmp.eq.s32.totalorder %s27, 1
      %p312 = por %p310, %p311
      %p314 = scmp.ne.s32.totalorder %s297, %s313
      %p315 = scmp.eq.s32.totalorder %s27, 0
      %p316 = por %p314, %p315
      %p317 = scmp.le.s32.totalorder 1, %s21
      %p318 = scmp.lt.s32.totalorder %s21, 3
      %p319 = pnand %p317, %p318
      %p320 = pneg %p319
      // Predicated region
      $region9: #{encoder_forward.11} parent=5 // pred_check
        _
      $region10: #{encoder_forward.11} parent=5 // pred_check_branch
        %322 = sbr.rel (%p319) target = $region12
      $region11: #{encoder_forward.11} parent=5 // pred_region
        %s323 = ssub.s32 %s21, 1
        // Predicated region
        $region13: #{encoder_forward.11} parent=11 // pred_check
          %p324 = pneg %p94
        $region14: #{encoder_forward.11} parent=11 // pred_check_branch
          %326 = sbr.rel (%p324) target = $region16
        $region15: #{encoder_forward.11} parent=11 // pred_region
          _
        $region16: #{encoder_forward.11} parent=11 // pred_fallthru
          _
        // Predicated region
        $region17: #{encoder_forward.11} parent=11 // pred_check
          %p327 = pneg %p115
        $region18: #{encoder_forward.11} parent=11 // pred_check_branch
          %329 = sbr.rel (%p327) target = $region20
        $region19: #{encoder_forward.11} parent=11 // pred_region
          _
        $region20: #{encoder_forward.11} parent=11 // pred_fallthru
          _
        // Predicated region
        $region21: #{encoder_forward.11} parent=11 // pred_check
          %p330 = pneg %p136
        $region22: #{encoder_forward.11} parent=11 // pred_check_branch
          %332 = sbr.rel (%p330) target = $region24
        $region23: #{encoder_forward.11} parent=11 // pred_region
          _
        $region24: #{encoder_forward.11} parent=11 // pred_fallthru
          _
        // Predicated region
        $region25: #{encoder_forward.11} parent=11 // pred_check
          %p333 = pneg %p157
        $region26: #{encoder_forward.11} parent=11 // pred_check_branch
          %335 = sbr.rel (%p333) target = $region28
        $region27: #{encoder_forward.11} parent=11 // pred_region
          _
        $region28: #{encoder_forward.11} parent=11 // pred_fallthru
          _
        // Predicated region
        $region29: #{encoder_forward.11} parent=11 // pred_check
          %p336 = pneg %p178
        $region30: #{encoder_forward.11} parent=11 // pred_check_branch
          %338 = sbr.rel (%p336) target = $region32
        $region31: #{encoder_forward.11} parent=11 // pred_region
          _
        $region32: #{encoder_forward.11} parent=11 // pred_fallthru
          _
        // Predicated region
        $region33: #{encoder_forward.11} parent=11 // pred_check
          %p339 = pneg %p199
        $region34: #{encoder_forward.11} parent=11 // pred_check_branch
          %341 = sbr.rel (%p339) target = $region36
        $region35: #{encoder_forward.11} parent=11 // pred_region
          _
        $region36: #{encoder_forward.11} parent=11 // pred_fallthru
          _
        // Predicated region
        $region37: #{encoder_forward.11} parent=11 // pred_check
          %p342 = pneg %p220
        $region38: #{encoder_forward.11} parent=11 // pred_check_branch
          %344 = sbr.rel (%p342) target = $region40
        $region39: #{encoder_forward.11} parent=11 // pred_region
          _
        $region40: #{encoder_forward.11} parent=11 // pred_fallthru
          _
        // Predicated region
        $region41: #{encoder_forward.11} parent=11 // pred_check
          %p345 = pneg %p241
        $region42: #{encoder_forward.11} parent=11 // pred_check_branch
          %347 = sbr.rel (%p345) target = $region44
        $region43: #{encoder_forward.11} parent=11 // pred_region
          _
        $region44: #{encoder_forward.11} parent=11 // pred_fallthru
          _
        // Predicated region
        $region45: #{encoder_forward.11} parent=11 // pred_check
          %p348 = pneg %p262
        $region46: #{encoder_forward.11} parent=11 // pred_check_branch
          %350 = sbr.rel (%p348) target = $region48
        $region47: #{encoder_forward.11} parent=11 // pred_region
          _
        $region48: #{encoder_forward.11} parent=11 // pred_fallthru
          _
        // Predicated region
        $region49: #{encoder_forward.11} parent=11 // pred_check
          %p351 = pneg %p283
        $region50: #{encoder_forward.11} parent=11 // pred_check_branch
          %353 = sbr.rel (%p351) target = $region52
        $region51: #{encoder_forward.11} parent=11 // pred_region
          _
        $region52: #{encoder_forward.11} parent=11 // pred_fallthru
          _
      $region12: #{encoder_forward.11} parent=5 // pred_fallthru
        _
      %p354 = scmp.lt.s32.totalorder %s21, 2
      // Predicated region
      $region53: #{encoder_forward.11} parent=5 // pred_check
        %p355 = pneg %p354
      $region54: #{encoder_forward.11} parent=5 // pred_check_branch
        %357 = sbr.rel (%p355) target = $region56
      $region55: #{encoder_forward.11} parent=5 // pred_region
        // Predicated region
        $region57: #{encoder_forward.11} parent=55 // pred_check
          %p358 = pneg %p41
        $region58: #{encoder_forward.11} parent=55 // pred_check_branch
          %360 = sbr.rel (%p358) target = $region60
        $region59: #{encoder_forward.11} parent=55 // pred_region
          %p361 = scmp.lt.s32.totalorder %s21, 1
          %s362 = scalar_select %p361, %s21, 1
          %s363 = smul.addr %s362, 8
          %s364 = scalar_lea.vmem %s0, %s363
        $region60: #{encoder_forward.11} parent=55 // pred_fallthru
          _
        // Predicated region
        $region61: #{encoder_forward.11} parent=55 // pred_check
          %p365 = pneg %p67
        $region62: #{encoder_forward.11} parent=55 // pred_check_branch
          %367 = sbr.rel (%p365) target = $region64
        $region63: #{encoder_forward.11} parent=55 // pred_region
          %p368 = scmp.lt.s32.totalorder %s21, 1
          %s369 = scalar_select %p368, %s21, 1
          %s370 = smul.addr %s369, 8
          %s371 = scalar_lea.vmem %s1, %s370
        $region64: #{encoder_forward.11} parent=55 // pred_fallthru
          _
      $region56: #{encoder_forward.11} parent=5 // pred_fallthru
        _
      %p372 = scmp.le.s32.totalorder 1, %s21
      %p373 = scmp.lt.s32.totalorder %s21, 3
      %p374 = pnand %p372, %p373
      %p375 = pneg %p374
      // Predicated region
      $region65: #{encoder_forward.11} parent=5 // pred_check
        _
      $region66: #{encoder_forward.11} parent=5 // pred_check_branch
        %377 = sbr.rel (%p374) target = $region68
      $region67: #{encoder_forward.11} parent=5 // pred_region
        %s378 = ssub.s32 %s21, 1
        %p379 = scmp.lt.s32.totalorder %s26, 1
        %s380 = scalar_select %p379, %s26, 1
        %s381 = smul.addr %s380, 8
        %s382 = scalar_lea.vmem %s0, %s381
        %p383 = pneg %p47
        %p384 = pneg %p44
        %p385 = scmp.lt.s32.totalorder %s26, 1
        %s386 = scalar_select %p385, %s26, 1
        %s387 = smul.addr %s386, 8
        %s388 = scalar_lea.vmem %s1, %s387
        %p389 = pneg %p73
        %p390 = pneg %p70
        %p391 = pneg %p94
        %p392 = pneg %p91
        %p393 = pneg %p115
        %p394 = pneg %p112
        %p395 = pneg %p136
        %p396 = pneg %p133
        %p397 = pneg %p157
        %p398 = pneg %p154
        %p399 = pneg %p178
        %p400 = pneg %p175
        %p401 = pneg %p199
        %p402 = pneg %p196
        %p403 = pneg %p220
        %p404 = pneg %p217
        %p405 = pneg %p241
        %p406 = pneg %p238
        %p407 = pneg %p262
        %p408 = pneg %p259
        %p409 = pneg %p283
        %p410 = pneg %p280
        %p411 = pneg %p309
        %p412 = pneg %p306
        %s413 = sand.u32 %s296, 1
        %s414 = scalar_lea.sflag [#allocation3], %s413
        %s415 = sand.u32 %s296, 1
        %s416 = smul.addr %s415, 8
        %s417 = scalar_lea.vmem [#allocation2], %s416
        %p418 = scmp.lt.s32.totalorder %s26, 1
        %s419 = scalar_select %p418, %s26, 1
        %s420 = smul.addr %s419, 8
        %s421 = scalar_lea.vmem %s0, %s420
        %p422 = scmp.lt.s32.totalorder %s26, 1
        %s423 = scalar_select %p422, %s26, 1
        %s424 = smul.addr %s423, 8
        %s425 = scalar_lea.vmem %s1, %s424
        %v427 = vld [vmem:[%s421] sm:$0xff]
        %v428 = vld [vmem:[%s425] sm:$0xff]
        %v429 = vpack.c.bf16 %v427, %v427
        %v430 = vld [vmem:[%s2] sm:$0xf]
        %v431 = vld [vmem:[%s2 + $0x4] sm:$0xf]
        %v432 = vld [vmem:[%s2 + $0x8] sm:$0xf]
        %v433 = vld [vmem:[%s2 + $0xc] sm:$0xf]
        %v434 = vld [vmem:[%s3] sm:$0x1]
        %v436 = vperm.slane %v434, 0
        %v442 = vunpack.c.l.b16 %v430
        %v443 = vunpack.c.l.b16 %v431
        %v444 = vunpack.c.l.b16 %v432
        %v445 = vunpack.c.l.b16 %v433
        %v446 = vpack.c.b16 %v443, %v442
        %v447 = vpack.c.b16 %v445, %v444
        %vm448 = vcmask 261120
        %v450 = vsel %vm448, %v429, 0
        %v453 = vsel %vm448, %v446, 0
        %v456 = vsel %vm448, %v447, 0
        %458 = vmatpush.bf16.xpose.msra.mxu0 0
        %459 = vmatpush.bf16.xpose.msra.mxu0 0
        %460 = vmatpush.bf16.xpose.msra.mxu0 0
        %461 = vmatpush.bf16.xpose.msra.mxu0 0
        %462 = vmatpush.bf16.xpose.msra.mxu0 0
        %463 = vmatpush.bf16.xpose.msra.mxu0 0
        %464 = vmatpush.bf16.xpose.msra.mxu0 %v456
        %465 = vmatpush.bf16.xpose.msra.mxu0 %v453
        %466 = vmatmul.bf16.gmra.mxu0 %v450
        %v467 = vpop.f32.mrf.mxu0
        %v468 = vadd.f32 %v436, %v467
        %v469 = vpop.f32.mrf.mxu0
        %470 = vdwg.mxu0
        %v471 = vadd.f32 %v468, %v428
        %v472 = vld [vmem:[%s4] sm:$0x1]
        %v473 = vld [vmem:[%s5] sm:$0x1]
        %v474 = vsel %vm448, %v471, 0.0
        %475 = vadd.xlane.f32.xlu0 %v474
        %v476 = vpop.xlane.xlu0 %475
        %v477 = vrcp.pop 32.0
        %v478 = vmul.f32 32.0, %v477
        %v479 = vsub.f32 1.0, %v478
        %v480 = vmul.f32 %v477, %v479
        %v481 = vadd.f32 %v477, %v480
        %vm482 = vweird.f32 %v477
        %v483 = vsel %vm482, %v477, %v481
        %v484 = vmul.f32 %v476, %v483
        %v485 = vsub.f32 %v471, %v484
        %v486 = vmul.f32 %v485, %v485
        %v487 = vsel %vm448, %v486, 0.0
        %488 = vadd.xlane.f32.xlu0 %v487
        %v489 = vpop.xlane.xlu0 %488
        %v490 = vmul.f32 %v489, %v483
        %v491 = vadd.f32 %v490, 1e-05
        %v492 = vrsqrt.pop %v491
        %v493 = vmul.f32 %v492, %v491
        %v494 = vmul.f32 %v493, %v492
        %v495 = vmul.f32 0.5, %v494
        %v496 = vsub.f32 1.5, %v495
        %v497 = vmul.f32 %v492, %v496
        %vm498 = vweird.f32 %v491
        %vm499 = vweird.f32 %v492
        %vm500 = vmor %vm498, %vm499
        %v501 = vsel %vm500, %v492, %v497
        %v502 = vmul.f32 %v485, %v501
        %v504 = vperm.slane %v472, 0
        %v506 = vmul.f32 %v502, %v504
        %v508 = vperm.slane %v473, 0
        %v510 = vadd.f32 %v506, %v508
        %v511 = vpack.c.bf16 %v510, %v510
        %v512 = vld [vmem:[%s6] sm:$0xf]
        %v513 = vld [vmem:[%s6 + $0x4] sm:$0xf]
        %v514 = vld [vmem:[%s6 + $0x8] sm:$0xf]
        %v515 = vld [vmem:[%s6 + $0xc] sm:$0xf]
        %v516 = vld [vmem:[%s6 + $0x10] sm:$0xf]
        %v517 = vld [vmem:[%s6 + $0x14] sm:$0xf]
        %v518 = vld [vmem:[%s6 + $0x18] sm:$0xf]
        %v519 = vld [vmem:[%s6 + $0x1c] sm:$0xf]
        %v520 = vld [vmem:[%s6 + $0x20] sm:$0xf]
        %v521 = vld [vmem:[%s6 + $0x24] sm:$0xf]
        %v522 = vld [vmem:[%s6 + $0x28] sm:$0xf]
        %v523 = vld [vmem:[%s6 + $0x2c] sm:$0xf]
        %v524 = vld [vmem:[%s6 + $0x30] sm:$0xf]
        %v525 = vld [vmem:[%s6 + $0x34] sm:$0xf]
        %v526 = vld [vmem:[%s6 + $0x38] sm:$0xf]
        %v527 = vld [vmem:[%s6 + $0x3c] sm:$0xf]
        %v528 = vld [vmem:[%s7] sm:$0x1]
        %v530 = vperm.slane %v528, 0
        %v548 = vunpack.c.l.b16 %v512
        %v549 = vunpack.c.l.b16 %v513
        %v550 = vunpack.c.l.b16 %v514
        %v551 = vunpack.c.l.b16 %v515
        %v552 = vunpack.c.l.b16 %v516
        %v553 = vunpack.c.l.b16 %v517
        %v554 = vunpack.c.l.b16 %v518
        %v555 = vunpack.c.l.b16 %v519
        %v556 = vunpack.c.l.b16 %v520
        %v557 = vunpack.c.l.b16 %v521
        %v558 = vunpack.c.l.b16 %v522
        %v559 = vunpack.c.l.b16 %v523
        %v560 = vunpack.c.l.b16 %v524
        %v561 = vunpack.c.l.b16 %v525
        %v562 = vunpack.c.l.b16 %v526
        %v563 = vunpack.c.l.b16 %v527
        %v564 = vpack.c.b16 %v549, %v548
        %v565 = vpack.c.b16 %v551, %v550
        %v566 = vpack.c.b16 %v553, %v552
        %v567 = vpack.c.b16 %v555, %v554
        %v568 = vpack.c.b16 %v557, %v556
        %v569 = vpack.c.b16 %v559, %v558
        %v570 = vpack.c.b16 %v561, %v560
        %v571 = vpack.c.b16 %v563, %v562
        %v573 = vsel %vm448, %v511, 0
        %v576 = vsel %vm448, %v564, 0
        %v579 = vsel %vm448, %v565, 0
        %v582 = vsel %vm448, %v566, 0
        %v585 = vsel %vm448, %v567, 0
        %v588 = vsel %vm448, %v568, 0
        %v591 = vsel %vm448, %v569, 0
        %v594 = vsel %vm448, %v570, 0
        %v597 = vsel %vm448, %v571, 0
        %599 = vmatpush.bf16.xpose.msra.mxu0 %v597
        %600 = vmatpush.bf16.xpose.msra.mxu0 %v594
        %601 = vmatpush.bf16.xpose.msra.mxu0 %v591
        %602 = vmatpush.bf16.xpose.msra.mxu0 %v588
        %603 = vmatpush.bf16.xpose.msra.mxu0 %v585
        %604 = vmatpush.bf16.xpose.msra.mxu0 %v582
        %605 = vmatpush.bf16.xpose.msra.mxu0 %v579
        %606 = vmatpush.bf16.xpose.msra.mxu0 %v576
        %607 = vmatmul.bf16.gmra.mxu0 %v573
        %v608 = vpop.f32.mrf.mxu0
        %v609 = vadd.f32 %v530, %v608
        %v610 = vpop.f32.mrf.mxu0
        %611 = vdwg.mxu0
        %v612 = vmax.f32 %v609, 0.0
        %v613 = vpack.c.bf16 %v612, %v612
        %v614 = vld [vmem:[%s8] sm:$0xf]
        %v615 = vld [vmem:[%s8 + $0x4] sm:$0xf]
        %v616 = vld [vmem:[%s8 + $0x8] sm:$0xf]
        %v617 = vld [vmem:[%s8 + $0xc] sm:$0xf]
        %v618 = vld [vmem:[%s9] sm:$0x1]
        %v620 = vperm.slane %v618, 0
        %v626 = vunpack.c.l.b16 %v614
        %v627 = vunpack.c.l.b16 %v615
        %v628 = vunpack.c.l.b16 %v616
        %v629 = vunpack.c.l.b16 %v617
        %v630 = vpack.c.b16 %v627, %v626
        %v631 = vpack.c.b16 %v629, %v628
        %634 = vmatpush.bf16.xpose.msra.mxu0 0
        %635 = vmatpush.bf16.xpose.msra.mxu0 0
        %636 = vmatpush.bf16.xpose.msra.mxu0 0
        %637 = vmatpush.bf16.xpose.msra.mxu0 0
        %638 = vmatpush.bf16.xpose.msra.mxu0 0
        %639 = vmatpush.bf16.xpose.msra.mxu0 0
        %640 = vmatpush.bf16.xpose.msra.mxu0 %v631
        %641 = vmatpush.bf16.xpose.msra.mxu0 %v630
        %642 = vmatmul.bf16.gmra.mxu0 %v613
        %v643 = vpop.f32.mrf.mxu0
        %v644 = vadd.f32 %v620, %v643
        %v645 = vpop.f32.mrf.mxu0
        %646 = vdwg.mxu0
        %v647 = vadd.f32 %v644, %v510
        %v648 = vld [vmem:[%s10] sm:$0x1]
        %v649 = vld [vmem:[%s11] sm:$0x1]
        %v650 = vsel %vm448, %v647, 0.0
        %651 = vadd.xlane.f32.xlu0 %v650
        %v652 = vpop.xlane.xlu0 %651
        %v653 = vmul.f32 %v652, %v483
        %v654 = vsub.f32 %v647, %v653
        %v655 = vmul.f32 %v654, %v654
        %v656 = vsel %vm448, %v655, 0.0
        %657 = vadd.xlane.f32.xlu0 %v656
        %v658 = vpop.xlane.xlu0 %657
        %v659 = vmul.f32 %v658, %v483
        %v660 = vadd.f32 %v659, 1e-05
        %v661 = vrsqrt.pop %v660
        %v662 = vmul.f32 %v661, %v660
        %v663 = vmul.f32 %v662, %v661
        %v664 = vmul.f32 0.5, %v663
        %v665 = vsub.f32 1.5, %v664
        %v666 = vmul.f32 %v661, %v665
        %vm667 = vweird.f32 %v660
        %vm668 = vweird.f32 %v661
        %vm669 = vmor %vm667, %vm668
        %v670 = vsel %vm669, %v661, %v666
        %v671 = vmul.f32 %v654, %v670
        %v673 = vperm.slane %v648, 0
        %v675 = vmul.f32 %v671, %v673
        %v677 = vperm.slane %v649, 0
        %v679 = vadd.f32 %v675, %v677
        %680 = vst.msk [vmem:[%s417] sm:$0xff] %vm448, %v679
        %s681 = sand.u32 %s296, 1
        %s682 = scalar_lea.sflag [#allocation3], %s681
        %s683 = sand.u32 %s296, 1
        %s684 = smul.addr %s683, 8
        %s685 = scalar_lea.vmem [#allocation2], %s684
        // Predicated region
        $region69: #{encoder_forward.11} parent=67 // pred_check
          %p686 = pneg %p306
        $region70: #{encoder_forward.11} parent=67 // pred_check_branch
          %688 = sbr.rel (%p686) target = $region72
        $region71: #{encoder_forward.11} parent=67 // pred_region
          %690 = vsyncadd %s682, 0
          %s691 = smul.addr %s26, 8
          %s692 = scalar_lea.hbm %s12, %s691
          %s694 = sshll.u32 %s685, 4
          %s695 = int_to_ptr.vmem [resolvable:$true] %s694
          %s696 = sshll.u32 %s692, 4
          %s697 = int_to_ptr.hbm [resolvable:$true] %s696
          %699 = dma.vmem_to_hbm [thread:$0]  %s695, 128, %s697, %s682
        $region72: #{encoder_forward.11} parent=67 // pred_fallthru
          _
      $region68: #{encoder_forward.11} parent=5 // pred_fallthru
        _
      %p700 = scmp.le.s32.totalorder 2, %s21
      // Predicated region
      $region73: #{encoder_forward.11} parent=5 // pred_check
        %p701 = pneg %p700
      $region74: #{encoder_forward.11} parent=5 // pred_check_branch
        %703 = sbr.rel (%p701) target = $region76
      $region75: #{encoder_forward.11} parent=5 // pred_region
        %s704 = ssub.s32 %s21, 2
        // Predicated region
        $region77: #{encoder_forward.11} parent=75 // pred_check
          %p705 = pneg %p312
        $region78: #{encoder_forward.11} parent=75 // pred_check_branch
          %707 = sbr.rel (%p705) target = $region80
        $region79: #{encoder_forward.11} parent=75 // pred_region
          %s708 = sand.u32 %s297, 1
          %s709 = scalar_lea.sflag [#allocation3], %s708
          %s710 = sand.u32 %s297, 1
          %s711 = smul.addr %s710, 8
          %s712 = scalar_lea.vmem [#allocation2], %s711
          %714 = dma.done %s709, 128
        $region80: #{encoder_forward.11} parent=75 // pred_fallthru
          _
      $region76: #{encoder_forward.11} parent=5 // pred_fallthru
        _
    $region6: #{encoder_forward.11} parent=1 // loop_footer
      %s25 = sadd.s32 1, %s21
    $region7: #{encoder_forward.11} parent=1 // loop_footer_branch
      %20 = sbr.rel target = $region3
    $region8: #{encoder_forward.11} parent=1 // loop_exit
      _
    %715 = vsyncpa [#allocation3], 1
    %s716 = scalar_lea.sflag [#allocation3], 1
    %717 = vsyncpa %s716, 1

</llo_original>
